<compile_context>
chip_gen: v7x
topology: tpu7x:2x2x1
jax: 0.10.0
libtpu: 0.0.40
codegen_flags: <defaults>
</compile_context>

<pallas_src>
import functools
import math

import jax
import jax.numpy as jnp
from jax.experimental import pallas as pl
from jax.experimental.pallas import tpu as pltpu

LANE = 128
SUBLANE = 8


def _round_up(x, m):
    return (x + m - 1) // m * m


def _cdiv(a, b):
    return -(-a // b)


def _pad_axis(a, target, axis):
    pad = target - a.shape[axis]
    if pad == 0:
        return a
    widths = [(0, 0)] * a.ndim
    widths[axis] = (0, pad)
    return jnp.pad(a, widths)


# ----------------------------------------------------------------------------
# One-time hardware / capability queries
# ----------------------------------------------------------------------------
@functools.lru_cache(maxsize=1)
def _tpu_vmem_and_cores():
    """Per-TensorCore VMEM capacity and TensorCores per chip (best effort)."""
    vmem = 64 * 2**20          # conservative default == v7x per-TC VMEM
    cores = None
    try:
        info = pltpu.get_tpu_info()
        vmem = int(getattr(info, "vmem_capacity_bytes", vmem))
        for name in ("num_cores", "core_count", "tensorcore_count", "num_tensorcores"):
            c = getattr(info, name, None)
            if c:
                cores = int(c)
                break
    except Exception:
        pass
    if cores is None:
        # Heuristic: only v7x exposes <= 64 MiB VMEM per TensorCore and has 2 TCs/chip.
        cores = 2 if vmem <= 64 * 2**20 else 1
    return vmem, cores


@functools.lru_cache(maxsize=1)
def _single_buffer_weights_supported():
    """One-time probe: can constant blocks use pipeline_mode=pl.Buffered(1)?"""
    if not hasattr(pl, "Buffered"):
        return False

    def k(x_ref, w_ref, o_ref):
        o_ref[...] = x_ref[...] + w_ref[...]

    try:
        f = pl.pallas_call(
            k,
            out_shape=jax.ShapeDtypeStruct((SUBLANE, LANE), jnp.float32),
            grid=(1,),
            in_specs=[pl.BlockSpec((SUBLANE, LANE), lambda i: (0, 0)),
                      pl.BlockSpec((SUBLANE, LANE), lambda i: (0, 0),
                                   pipeline_mode=pl.Buffered(1))],
            out_specs=pl.BlockSpec((SUBLANE, LANE), lambda i: (0, 0)),
        )
        jax.block_until_ready(f(jnp.zeros((SUBLANE, LANE), jnp.float32),
                                jnp.zeros((SUBLANE, LANE), jnp.float32)))
        return True
    except Exception:
        return False


# ----------------------------------------------------------------------------
# Kernel
# ----------------------------------------------------------------------------
def encoder_block_kernel(x_ref,
                         wqkv_ref, bqkv_ref, wo_ref, bo_ref,
                         w1_ref, b1_ref, w2_ref, b2_ref,
                         g1_ref, be1_ref, g2_ref, be2_ref,
                         o_ref,
                         *, seq_pad, seq_real, e_real):
    """One grid step: (rows, Ep) slab holding bt = rows // seq_pad sequences."""
    x = x_ref[...]                                   # (R, Ep) f32; padded lanes/rows are 0
    rows, ep = x.shape
    bt = rows // seq_pad
    inv_e = 1.0 / float(e_real)
    scale = 1.0 / math.sqrt(float(e_real))           # num_heads = 1 -> head_dim = E

    lane_ok = None
    if ep > e_real:
        lane_ok = jax.lax.broadcasted_iota(jnp.int32, (1, ep), 1) < e_real

    def layer_norm(h, g, b):
        # Padded lanes of h are exactly 0, so sum(h) over all lanes == sum over real E.
        mu = jnp.sum(h, axis=-1, keepdims=True) * inv_e
        d = h - mu
        dm = d if lane_ok is None else jnp.where(lane_ok, d, 0.0)
        var = jnp.sum(dm * dm, axis=-1, keepdims=True) * inv_e     # centered (stable) form
        # Padded lanes: d = -mu, but g = 0 and b = 0 there -> output lanes stay 0.
        return d * jax.lax.rsqrt(var + 1e-5) * g + b

    # ---- fused Q/K/V projection: one MXU matmul (bf16 operands, f32 accumulation) ----
    x_bf = x.astype(jnp.bfloat16)
    qkv = jnp.dot(x_bf, wqkv_ref[...],
                  preferred_element_type=jnp.float32) + bqkv_ref[...]      # (R, 3Ep) f32
    # Cast to bf16 once; reshapes split the sublane dim at multiples of 8 (seq_pad % 8 == 0).
    q = qkv[:, 0 * ep:1 * ep].astype(jnp.bfloat16).reshape(bt, seq_pad, ep)
    k = qkv[:, 1 * ep:2 * ep].astype(jnp.bfloat16).reshape(bt, seq_pad, ep)
    v = qkv[:, 2 * ep:3 * ep].astype(jnp.bfloat16).reshape(bt, seq_pad, ep)

    # ---- single-head attention (per sequence), no explicit transpose ----
    s = jnp.einsum('bqd,bkd->bqk', q, k,
                   preferred_element_type=jnp.float32) * scale             # (bt, Lp, Lp) f32
    if seq_pad > seq_real:
        key_ok = jax.lax.broadcasted_iota(jnp.int32, (1, 1, seq_pad), 2) < seq_real
        s = jnp.where(key_ok, s, -1e30)              # mask padded key positions
    s = s - jnp.max(s, axis=-1, keepdims=True)
    p = jnp.exp(s)
    p = p * pl.reciprocal(jnp.sum(p, axis=-1, keepdims=True), approx=True)
    attn = jnp.einsum('bqk,bkd->bqd', p.astype(jnp.bfloat16), v,
                      preferred_element_type=jnp.float32).reshape(rows, ep)
    attn_out = jnp.dot(attn.astype(jnp.bfloat16), wo_ref[...],
                       preferred_element_type=jnp.float32) + bo_ref[...]

    # ---- residual + dropout(p=0 -> identity) + LayerNorm1 ----
    h = layer_norm(x + attn_out, g1_ref[...], be1_ref[...])

    # ---- FFN: Linear -> Dropout(0) -> ReLU -> Linear ----
    f = jnp.dot(h.astype(jnp.bfloat16), w1_ref[...],
                preferred_element_type=jnp.float32) + b1_ref[...]          # (R, Hp)
    f = jnp.maximum(f, 0.0)
    f = jnp.dot(f.astype(jnp.bfloat16), w2_ref[...],
                preferred_element_type=jnp.float32) + b2_ref[...]          # (R, Ep)

    # ---- residual + LayerNorm2 ----
    o_ref[...] = layer_norm(h + f, g2_ref[...], be2_ref[...]).astype(o_ref.dtype)


# ----------------------------------------------------------------------------
# Host-side wrapper
# ----------------------------------------------------------------------------
def prepare_weights(params):
    """One-time weight prep: pad to lane multiples, fuse QKV, cast matmul weights to bf16."""
    E = params["wq"].shape[0]
    H = params["w1"].shape[1]
    Ep = _round_up(E, LANE)
    Hp = _round_up(H, LANE)
    f32, bf16 = jnp.float32, jnp.bfloat16

    def pad_w(w, rt, ct):
        return _pad_axis(_pad_axis(w, rt, 0), ct, 1)

    wqkv = jnp.concatenate([pad_w(params["wq"], Ep, Ep),
                            pad_w(params["wk"], Ep, Ep),
                            pad_w(params["wv"], Ep, Ep)], axis=1).astype(bf16)
    bqkv = jnp.concatenate([_pad_axis(params["bq"], Ep, 1),
                            _pad_axis(params["bk"], Ep, 1),
                            _pad_axis(params["bv"], Ep, 1)], axis=1).astype(f32)
    wo = pad_w(params["wo"], Ep, Ep).astype(bf16)
    bo = _pad_axis(params["bo"], Ep, 1).astype(f32)
    w1 = pad_w(params["w1"], Ep, Hp).astype(bf16)
    b1 = _pad_axis(params["b1"], Hp, 1).astype(f32)
    w2 = pad_w(params["w2"], Hp, Ep).astype(bf16)
    b2 = _pad_axis(params["b2"], Ep, 1).astype(f32)
    g1 = _pad_axis(params["g1"], Ep, 1).astype(f32)
    be1 = _pad_axis(params["be1"], Ep, 1).astype(f32)
    g2 = _pad_axis(params["g2"], Ep, 1).astype(f32)
    be2 = _pad_axis(params["be2"], Ep, 1).astype(f32)

    tensors = (wqkv, bqkv, wo, bo, w1, b1, w2, b2, g1, be1, g2, be2)
    tensors = jax.block_until_ready(tensors)
    return {"E": E, "H": H, "Ep": Ep, "Hp": Hp, "tensors": tensors}


def encoder_block(x, prepped, *, target_rows=None, out_dtype=jnp.float32):
    """x: (B, L, E) float32.  prepped: output of prepare_weights()."""
    B, L, E = x.shape
    assert E == prepped["E"], "input dim mismatch with prepared weights"
    Ep, Hp = prepped["Ep"], prepped["Hp"]
    weights = prepped["tensors"]
    Lp = _round_up(L, SUBLANE)                       # sublane-aligned sequence length

    # --- per-generation VMEM budget & row-slab target ---
    vmem_cap, cores = _tpu_vmem_and_cores()
    if vmem_cap >= 100 * 2**20:                      # v5e / v6e: 128 MiB per core
        budget = 96 * 2**20
        default_rows = 1024
    else:                                            # v7x: 64 MiB per core -> leave headroom
        budget = min(52 * 2**20, int(vmem_cap * 0.8))
        default_rows = 512
    if target_rows is None:
        target_rows = default_rows

    single_buf = _single_buffer_weights_supported()
    weight_bytes = sum(int(w.size) * w.dtype.itemsize for w in weights)
    weight_vmem = weight_bytes if single_buf else 2 * weight_bytes

    out_itemsize = jnp.dtype(out_dtype).itemsize

    def step_bytes(bt):
        rows = bt * Lp
        io = 2 * rows * Ep * (4 + out_itemsize)              # x / out blocks, double-buffered
        act = rows * (40 * Ep + 8 * Hp)                      # qkv, q/k/v, attn, h, ffn (f32+bf16)
        att = bt * Lp * Lp * 10                              # scores + probs (f32) + probs (bf16)
        return io + act + att

    # --- row tile: bt sequences per step, clamped to B, no gcd inflation (Lp % 8 == 0) ---
    bt = max(1, min(B, target_rows // Lp))
    # v7x has 2 TensorCores: make sure the "parallel" grid axis has >= 2 steps.
    if cores >= 2 and B >= 2 and _cdiv(B, bt) < 2:
        bt = _cdiv(B, 2)
    # shrink the row tile until the step fits the per-generation VMEM budget
    while bt > 1 and weight_vmem + step_bytes(bt) > budget:
        bt = max(1, bt // 2)

    b_pad = _round_up(B, bt)
    rows_per_block = bt * Lp
    grid = (b_pad // bt,)

    # --- pad batch / seq / lanes, fold batch into rows -> lane-dense 2-D input ---
    xp = _pad_axis(_pad_axis(_pad_axis(x.astype(jnp.float32), b_pad, 0), Lp, 1), Ep, 2)
    x2 = xp.reshape(b_pad * Lp, Ep)

    # --- cost estimate & VMEM request ---
    R = b_pad * Lp
    flops = 2 * R * (3 * Ep * Ep + Ep * Ep + 2 * Ep * Hp) + 4 * b_pad * Lp * Lp * Ep
    transc = b_pad * Lp * Lp + 4 * R
    bytes_accessed = weight_bytes + R * Ep * 4 + R * Ep * out_itemsize
    cost = pl.CostEstimate(flops=int(flops), transcendentals=int(transc),
                           bytes_accessed=int(bytes_accessed))
    vmem_limit = int(min(budget,
                         max(32 * 2**20, weight_vmem + step_bytes(bt) + 16 * 2**20)))

    kernel = functools.partial(encoder_block_kernel,
                               seq_pad=Lp, seq_real=L, e_real=E)

    def const_spec(arr):
        shape = arr.shape
        idx = lambda b: (0,) * len(shape)
        if single_buf:
            # constant index_map across the grid -> no need to double-buffer these blocks
            return pl.BlockSpec(shape, idx, pipeline_mode=pl.Buffered(1))
        return pl.BlockSpec(shape, idx)

    in_specs = [pl.BlockSpec((rows_per_block, Ep), lambda b: (b, 0))]
    in_specs += [const_spec(w) for w in weights]

    out2 = pl.pallas_call(
        kernel,
        out_shape=jax.ShapeDtypeStruct((b_pad * Lp, Ep), out_dtype),
        grid_spec=pltpu.PrefetchScalarGridSpec(
            num_scalar_prefetch=0,
            grid=grid,
            in_specs=in_specs,
            out_specs=pl.BlockSpec((rows_per_block, Ep), lambda b: (b, 0)),
        ),
        compiler_params=pltpu.CompilerParams(
            dimension_semantics=("parallel",),
            vmem_limit_bytes=vmem_limit),
        cost_estimate=cost,
    )(x2, *weights)

    return out2.reshape(b_pad, Lp, Ep)[:B, :L, :E]


# ----------------------------------------------------------------------------
# Reference (pure-JAX f32, mirrors the PyTorch EncoderBlock with dropout=0)
# ----------------------------------------------------------------------------
def encoder_block_reference(x, params):
    E = x.shape[-1]
    q = x @ params["wq"] + params["bq"]
    k = x @ params["wk"] + params["bk"]
    v = x @ params["wv"] + params["bv"]
    s = jnp.einsum('bqd,bkd->bqk', q, k) / math.sqrt(E)
    p = jax.nn.softmax(s, axis=-1)
    attn = jnp.einsum('bqk,bkd->bqd', p, v) @ params["wo"] + params["bo"]

    def ln(h, g, b):
        mu = jnp.mean(h, -1, keepdims=True)
        var = jnp.mean((h - mu) ** 2, -1, keepdims=True)
        return (h - mu) / jnp.sqrt(var + 1e-5) * g + b

    h = ln(x + attn, params["g1"], params["be1"])
    f = jnp.maximum(h @ params["w1"] + params["b1"], 0.0) @ params["w2"] + params["b2"]
    return ln(h + f, params["g2"], params["be2"])


def init_params(key, input_dim, hidden_dim):
    """Deterministic synthetic init. Weights stored pre-transposed: (in, out)."""
    ks = jax.random.split(key, 8)
    E, H = input_dim, hidden_dim
    s = 0.1
    return {
        "wq": s * jax.random.normal(ks[0], (E, E), jnp.float32),
        "wk": s * jax.random.normal(ks[1], (E, E), jnp.float32),
        "wv": s * jax.random.normal(ks[2], (E, E), jnp.float32),
        "bq": s * jax.random.normal(ks[3], (1, E), jnp.float32),
        "bk": jnp.zeros((1, E), jnp.float32),
        "bv": jnp.zeros((1, E), jnp.float32),
        "wo": s * jax.random.normal(ks[4], (E, E), jnp.float32),
        "bo": jnp.zeros((1, E), jnp.float32),
        "w1": s * jax.random.normal(ks[5], (E, H), jnp.float32),
        "b1": jnp.zeros((1, H), jnp.float32),
        "w2": s * jax.random.normal(ks[6], (H, E), jnp.float32),
        "b2": jnp.zeros((1, E), jnp.float32),
        # LayerNorm default init (weight=1, bias=0)
        "g1": jnp.ones((1, E), jnp.float32),
        "be1": jnp.zeros((1, E), jnp.float32),
        "g2": jnp.ones((1, E), jnp.float32),
        "be2": jnp.zeros((1, E), jnp.float32),
    }


if __name__ == "__main__":
    # Spec shapes: seq_len = 10, num_heads = 1, 3-sample slice of the batch; small E/H.
    B, L, E, H = 3, 10, 32, 64
    key = jax.random.PRNGKey(0)
    kx, kp = jax.random.split(key)
    x = jax.random.normal(kx, (B, L, E), jnp.float32)
    params = init_params(kp, E, H)

    prepped = prepare_weights(params)        # hoisted one-time weight prep
    out = encoder_block(x, prepped)
    jax.block_until_ready(out)

    assert out.shape == (B, L, E)
    assert bool(jnp.all(jnp.isfinite(out)))

    # Loose check vs. a pure-f32 reference (kernel uses bf16 MXU operands + approx recip).
    ref = encoder_block_reference(x, params)
    err = float(jnp.max(jnp.abs(out - ref)))
    assert err < 0.15, f"max abs error vs f32 reference too large: {err}"

    print("KERNEL_OK")
</pallas_src>

<mosaic_0001>
module attributes {stable_mosaic.version = 11 : i64} {
  func.func @k(%arg0: i32, %arg1: memref<8x128xf32, #tpu.memory_space<vmem>>, %arg2: memref<8x128xf32, #tpu.memory_space<vmem>>, %arg3: memref<8x128xf32, #tpu.memory_space<vmem>>) attributes {dimension_semantics = [#tpu.dimension_semantics<arbitrary>], iteration_bounds = array<i64: 1>, scalar_prefetch = 0 : i64, scratch_operands = 0 : i64, tpu.core_type = #tpu.core_type<tc>, window_params = [{pipeline_mode = #tpu.pipeline_mode<synchronous>, transform_indices = @transform_0, window_bounds = array<i64: 8, 128>}, {pipeline_mode = #tpu.pipeline_mode<synchronous>, transform_indices = @transform_1, window_bounds = array<i64: 8, 128>}, {pipeline_mode = #tpu.pipeline_mode<synchronous>, transform_indices = @transform_2, window_bounds = array<i64: 8, 128>}]} {
    %c0 = arith.constant 0 : index
    %c0_0 = arith.constant 0 : index
    %0 = vector.load %arg1[%c0, %c0_0] : memref<8x128xf32, #tpu.memory_space<vmem>>, vector<8x128xf32>
    %c0_1 = arith.constant 0 : index
    %c0_2 = arith.constant 0 : index
    %1 = vector.load %arg2[%c0_1, %c0_2] : memref<8x128xf32, #tpu.memory_space<vmem>>, vector<8x128xf32>
    %2 = arith.addf %0, %1 : vector<8x128xf32>
    %c0_3 = arith.constant 0 : index
    %c0_4 = arith.constant 0 : index
    %3 = vector.load %arg3[%c0_3, %c0_4] : memref<8x128xf32, #tpu.memory_space<vmem>>, vector<8x128xf32>
    tpu.vector_store %arg3[%c0_3, %c0_4], %2 {strides = array<i32>} : memref<8x128xf32, #tpu.memory_space<vmem>>, vector<8x128xf32>,
    return
  }
  func.func @transform_0(%arg0: i32) -> (i32, i32) {
    %c0_i32 = arith.constant 0 : i32
    %c0_i32_0 = arith.constant 0 : i32
    %c0_i32_1 = arith.constant 0 : i32
    return %c0_i32, %c0_i32_0 : i32, i32
  }
  func.func @transform_1(%arg0: i32) -> (i32, i32) {
    %c0_i32 = arith.constant 0 : i32
    %c0_i32_0 = arith.constant 0 : i32
    %c0_i32_1 = arith.constant 0 : i32
    return %c0_i32, %c0_i32_0 : i32, i32
  }
  func.func @transform_2(%arg0: i32) -> (i32, i32) {
    %c0_i32 = arith.constant 0 : i32
    %c0_i32_0 = arith.constant 0 : i32
    %c0_i32_1 = arith.constant 0 : i32
    return %c0_i32, %c0_i32_0 : i32, i32
  }
}

module attributes {stable_mosaic.version = 11 : i64} {
  func.func @encoder_block_kernel(%arg0: i32, %arg1: memref<32x128xf32, #tpu.memory_space<vmem>>, %arg2: memref<128x384xbf16, #tpu.memory_space<vmem>>, %arg3: memref<1x384xf32, #tpu.memory_space<vmem>>, %arg4: memref<128x128xbf16, #tpu.memory_space<vmem>>, %arg5: memref<1x128xf32, #tpu.memory_space<vmem>>, %arg6: memref<128x128xbf16, #tpu.memory_space<vmem>>, %arg7: memref<1x128xf32, #tpu.memory_space<vmem>>, %arg8: memref<128x128xbf16, #tpu.memory_space<vmem>>, %arg9: memref<1x128xf32, #tpu.memory_space<vmem>>, %arg10: memref<1x128xf32, #tpu.memory_space<vmem>>, %arg11: memref<1x128xf32, #tpu.memory_space<vmem>>, %arg12: memref<1x128xf32, #tpu.memory_space<vmem>>, %arg13: memref<1x128xf32, #tpu.memory_space<vmem>>, %arg14: memref<32x128xf32, #tpu.memory_space<vmem>>) attributes {dimension_semantics = [#tpu.dimension_semantics<parallel>], iteration_bounds = array<i64: 2>, scalar_prefetch = 0 : i64, scratch_operands = 0 : i64, tpu.core_type = #tpu.core_type<tc>, window_params = [{transform_indices = @transform_0, window_bounds = array<i64: 32, 128>}, {pipeline_mode = #tpu.pipeline_mode<synchronous>, transform_indices = @transform_1, window_bounds = array<i64: 128, 384>}, {pipeline_mode = #tpu.pipeline_mode<synchronous>, transform_indices = @transform_2, window_bounds = array<i64: 1, 384>}, {pipeline_mode = #tpu.pipeline_mode<synchronous>, transform_indices = @transform_3, window_bounds = array<i64: 128, 128>}, {pipeline_mode = #tpu.pipeline_mode<synchronous>, transform_indices = @transform_4, window_bounds = array<i64: 1, 128>}, {pipeline_mode = #tpu.pipeline_mode<synchronous>, transform_indices = @transform_5, window_bounds = array<i64: 128, 128>}, {pipeline_mode = #tpu.pipeline_mode<synchronous>, transform_indices = @transform_6, window_bounds = array<i64: 1, 128>}, {pipeline_mode = #tpu.pipeline_mode<synchronous>, transform_indices = @transform_7, window_bounds = array<i64: 128, 128>}, {pipeline_mode = #tpu.pipeline_mode<synchronous>, transform_indices = @transform_8, window_bounds = array<i64: 1, 128>}, {pipeline_mode = #tpu.pipeline_mode<synchronous>, transform_indices = @transform_9, window_bounds = array<i64: 1, 128>}, {pipeline_mode = #tpu.pipeline_mode<synchronous>, transform_indices = @transform_10, window_bounds = array<i64: 1, 128>}, {pipeline_mode = #tpu.pipeline_mode<synchronous>, transform_indices = @transform_11, window_bounds = array<i64: 1, 128>}, {pipeline_mode = #tpu.pipeline_mode<synchronous>, transform_indices = @transform_12, window_bounds = array<i64: 1, 128>}, {transform_indices = @transform_13, window_bounds = array<i64: 32, 128>}]} {
    %c0 = arith.constant 0 : index
    %c0_0 = arith.constant 0 : index
    %0 = vector.load %arg1[%c0, %c0_0] : memref<32x128xf32, #tpu.memory_space<vmem>>, vector<32x128xf32>
    %1 = tpu.iota {dimensions = array<i32: 1>} : vector<1x128xi32>
    %c32_i32 = arith.constant 32 : i32
    %2 = vector.broadcast %c32_i32 : i32 to vector<1x128xi32>
    %3 = arith.cmpi slt, %1, %2 : vector<1x128xi32>
    %4 = arith.truncf %0 : vector<32x128xf32> to vector<32x128xbf16>
    %c0_1 = arith.constant 0 : index
    %c0_2 = arith.constant 0 : index
    %5 = vector.load %arg2[%c0_1, %c0_2] : memref<128x384xbf16, #tpu.memory_space<vmem>>, vector<128x384xbf16>
    %cst = arith.constant dense<0.000000e+00> : vector<32x384xf32>
    %6 = tpu.matmul %4, %5, %cst {dimension_numbers = #tpu.dot_dimension_numbers<[1], [0], [0], [1], [0, 0, 1, 1], [], []>} : vector<32x128xbf16>, vector<128x384xbf16>, vector<32x384xf32> -> vector<32x384xf32>
    %c0_3 = arith.constant 0 : index
    %c0_4 = arith.constant 0 : index
    %7 = vector.load %arg3[%c0_3, %c0_4] : memref<1x384xf32, #tpu.memory_space<vmem>>, vector<1x384xf32>
    %8 = vector.broadcast %7 : vector<1x384xf32> to vector<32x384xf32>
    %9 = arith.addf %6, %8 : vector<32x384xf32>
    %10 = vector.extract_strided_slice %9 {offsets = [0, 0], sizes = [32, 128], strides = [1, 1]} : vector<32x384xf32> to vector<32x128xf32>
    %11 = arith.truncf %10 : vector<32x128xf32> to vector<32x128xbf16>
    %12 = vector.shape_cast %11 : vector<32x128xbf16> to vector<2x16x128xbf16>
    %13 = vector.extract_strided_slice %9 {offsets = [0, 128], sizes = [32, 128], strides = [1, 1]} : vector<32x384xf32> to vector<32x128xf32>
    %14 = arith.truncf %13 : vector<32x128xf32> to vector<32x128xbf16>
    %15 = vector.shape_cast %14 : vector<32x128xbf16> to vector<2x16x128xbf16>
    %16 = vector.extract_strided_slice %9 {offsets = [0, 256], sizes = [32, 128], strides = [1, 1]} : vector<32x384xf32> to vector<32x128xf32>
    %17 = arith.truncf %16 : vector<32x128xf32> to vector<32x128xbf16>
    %18 = vector.shape_cast %17 : vector<32x128xbf16> to vector<2x16x128xbf16>
    "tpu.trace_start"() <{level = 10 : i32, message = "bqd,bkd->bqk"}> : () -> ()
    %cst_5 = arith.constant dense<0.000000e+00> : vector<2x16x16xf32>
    %19 = tpu.matmul %12, %15, %cst_5 {dimension_numbers = #tpu.dot_dimension_numbers<[2], [2], [1], [1], [0, 0, 0, 1, 1, 1], [0], [0]>} : vector<2x16x128xbf16>, vector<2x16x128xbf16>, vector<2x16x16xf32> -> vector<2x16x16xf32>
    "tpu.trace_stop"() : () -> ()
    %cst_6 = arith.constant 0.176776692 : f32
    %20 = vector.broadcast %cst_6 : f32 to vector<2x16x16xf32>
    %21 = arith.mulf %19, %20 : vector<2x16x16xf32>
    %22 = tpu.iota {dimensions = array<i32: 2>} : vector<1x1x16xi32>
    %c10_i32 = arith.constant 10 : i32
    %23 = vector.broadcast %c10_i32 : i32 to vector<1x1x16xi32>
    %24 = arith.cmpi slt, %22, %23 : vector<1x1x16xi32>
    %cst_7 = arith.constant -1.000000e+30 : f32
    %25 = vector.shape_cast %24 : vector<1x1x16xi1> to vector<1x1x16xi1>
    %26 = vector.broadcast %25 : vector<1x1x16xi1> to vector<2x16x16xi1>
    %27 = vector.broadcast %cst_7 : f32 to vector<2x16x16xf32>
    %28 = arith.select %26, %21, %27 : vector<2x16x16xi1>, vector<2x16x16xf32>
    %cst_8 = arith.constant dense<0xFF800000> : vector<2x16xf32>
    %29 = vector.multi_reduction <maximumf>, %28, %cst_8 [2] : vector<2x16x16xf32> to vector<2x16xf32>
    %30 = vector.shape_cast %29 : vector<2x16xf32> to vector<2x16x1xf32>
    %31 = vector.broadcast %30 : vector<2x16x1xf32> to vector<2x16x16xf32>
    %32 = arith.subf %28, %31 : vector<2x16x16xf32>
    %33 = math.exp %32 : vector<2x16x16xf32>
    %cst_9 = arith.constant dense<0.000000e+00> : vector<2x16xf32>
    %34 = vector.multi_reduction <add>, %33, %cst_9 [2] : vector<2x16x16xf32> to vector<2x16xf32>
    %35 = vector.shape_cast %34 : vector<2x16xf32> to vector<2x16x1xf32>
    %36 = tpu.reciprocal %35 {approx = true} : vector<2x16x1xf32> -> vector<2x16x1xf32>
    %37 = vector.broadcast %36 : vector<2x16x1xf32> to vector<2x16x16xf32>
    %38 = arith.mulf %33, %37 : vector<2x16x16xf32>
    %39 = arith.truncf %38 : vector<2x16x16xf32> to vector<2x16x16xbf16>
    "tpu.trace_start"() <{level = 10 : i32, message = "bqk,bkd->bqd"}> : () -> ()
    %cst_10 = arith.constant dense<0.000000e+00> : vector<2x16x128xf32>
    %40 = tpu.matmul %39, %18, %cst_10 {dimension_numbers = #tpu.dot_dimension_numbers<[2], [1], [1], [2], [0, 0, 0, 1, 1, 2], [0], [0]>} : vector<2x16x16xbf16>, vector<2x16x128xbf16>, vector<2x16x128xf32> -> vector<2x16x128xf32>
    "tpu.trace_stop"() : () -> ()
    %41 = vector.shape_cast %40 : vector<2x16x128xf32> to vector<32x128xf32>
    %42 = arith.truncf %41 : vector<32x128xf32> to vector<32x128xbf16>
    %c0_11 = arith.constant 0 : index
    %c0_12 = arith.constant 0 : index
    %43 = vector.load %arg4[%c0_11, %c0_12] : memref<128x128xbf16, #tpu.memory_space<vmem>>, vector<128x128xbf16>
    %cst_13 = arith.constant dense<0.000000e+00> : vector<32x128xf32>
    %44 = tpu.matmul %42, %43, %cst_13 {dimension_numbers = #tpu.dot_dimension_numbers<[1], [0], [0], [1], [0, 0, 1, 1], [], []>} : vector<32x128xbf16>, vector<128x128xbf16>, vector<32x128xf32> -> vector<32x128xf32>
    %c0_14 = arith.constant 0 : index
    %c0_15 = arith.constant 0 : index
    %45 = vector.load %arg5[%c0_14, %c0_15] : memref<1x128xf32, #tpu.memory_space<vmem>>, vector<1x128xf32>
    %46 = vector.broadcast %45 : vector<1x128xf32> to vector<32x128xf32>
    %47 = arith.addf %44, %46 : vector<32x128xf32>
    %48 = arith.addf %0, %47 : vector<32x128xf32>
    %c0_16 = arith.constant 0 : index
    %c0_17 = arith.constant 0 : index
    %49 = vector.load %arg10[%c0_16, %c0_17] : memref<1x128xf32, #tpu.memory_space<vmem>>, vector<1x128xf32>
    %c0_18 = arith.constant 0 : index
    %c0_19 = arith.constant 0 : index
    %50 = vector.load %arg11[%c0_18, %c0_19] : memref<1x128xf32, #tpu.memory_space<vmem>>, vector<1x128xf32>
    %cst_20 = arith.constant dense<0.000000e+00> : vector<32xf32>
    %51 = vector.multi_reduction <add>, %48, %cst_20 [1] : vector<32x128xf32> to vector<32xf32>
    %52 = vector.shape_cast %51 : vector<32xf32> to vector<32x1xf32>
    %cst_21 = arith.constant 3.125000e-02 : f32
    %53 = vector.broadcast %cst_21 : f32 to vector<32x1xf32>
    %54 = arith.mulf %52, %53 : vector<32x1xf32>
    %55 = vector.broadcast %54 : vector<32x1xf32> to vector<32x128xf32>
    %56 = arith.subf %48, %55 : vector<32x128xf32>
    %cst_22 = arith.constant 0.000000e+00 : f32
    %57 = vector.shape_cast %3 : vector<1x128xi1> to vector<1x128xi1>
    %58 = vector.broadcast %57 : vector<1x128xi1> to vector<32x128xi1>
    %59 = vector.broadcast %cst_22 : f32 to vector<32x128xf32>
    %60 = arith.select %58, %56, %59 : vector<32x128xi1>, vector<32x128xf32>
    %61 = arith.mulf %60, %60 : vector<32x128xf32>
    %cst_23 = arith.constant dense<0.000000e+00> : vector<32xf32>
    %62 = vector.multi_reduction <add>, %61, %cst_23 [1] : vector<32x128xf32> to vector<32xf32>
    %63 = vector.shape_cast %62 : vector<32xf32> to vector<32x1xf32>
    %cst_24 = arith.constant 3.125000e-02 : f32
    %64 = vector.broadcast %cst_24 : f32 to vector<32x1xf32>
    %65 = arith.mulf %63, %64 : vector<32x1xf32>
    %cst_25 = arith.constant 9.99999974E-6 : f32
    %66 = vector.broadcast %cst_25 : f32 to vector<32x1xf32>
    %67 = arith.addf %65, %66 : vector<32x1xf32>
    %68 = math.rsqrt %67 : vector<32x1xf32>
    %69 = vector.broadcast %68 : vector<32x1xf32> to vector<32x128xf32>
    %70 = arith.mulf %56, %69 : vector<32x128xf32>
    %71 = vector.broadcast %49 : vector<1x128xf32> to vector<32x128xf32>
    %72 = arith.mulf %70, %71 : vector<32x128xf32>
    %73 = vector.broadcast %50 : vector<1x128xf32> to vector<32x128xf32>
    %74 = arith.addf %72, %73 : vector<32x128xf32>
    %75 = arith.truncf %74 : vector<32x128xf32> to vector<32x128xbf16>
    %c0_26 = arith.constant 0 : index
    %c0_27 = arith.constant 0 : index
    %76 = vector.load %arg6[%c0_26, %c0_27] : memref<128x128xbf16, #tpu.memory_space<vmem>>, vector<128x128xbf16>
    %cst_28 = arith.constant dense<0.000000e+00> : vector<32x128xf32>
    %77 = tpu.matmul %75, %76, %cst_28 {dimension_numbers = #tpu.dot_dimension_numbers<[1], [0], [0], [1], [0, 0, 1, 1], [], []>} : vector<32x128xbf16>, vector<128x128xbf16>, vector<32x128xf32> -> vector<32x128xf32>
    %c0_29 = arith.constant 0 : index
    %c0_30 = arith.constant 0 : index
    %78 = vector.load %arg7[%c0_29, %c0_30] : memref<1x128xf32, #tpu.memory_space<vmem>>, vector<1x128xf32>
    %79 = vector.broadcast %78 : vector<1x128xf32> to vector<32x128xf32>
    %80 = arith.addf %77, %79 : vector<32x128xf32>
    %cst_31 = arith.constant 0.000000e+00 : f32
    %81 = vector.broadcast %cst_31 : f32 to vector<32x128xf32>
    %82 = arith.maximumf %80, %81 : vector<32x128xf32>
    %83 = arith.truncf %82 : vector<32x128xf32> to vector<32x128xbf16>
    %c0_32 = arith.constant 0 : index
    %c0_33 = arith.constant 0 : index
    %84 = vector.load %arg8[%c0_32, %c0_33] : memref<128x128xbf16, #tpu.memory_space<vmem>>, vector<128x128xbf16>
    %cst_34 = arith.constant dense<0.000000e+00> : vector<32x128xf32>
    %85 = tpu.matmul %83, %84, %cst_34 {dimension_numbers = #tpu.dot_dimension_numbers<[1], [0], [0], [1], [0, 0, 1, 1], [], []>} : vector<32x128xbf16>, vector<128x128xbf16>, vector<32x128xf32> -> vector<32x128xf32>
    %c0_35 = arith.constant 0 : index
    %c0_36 = arith.constant 0 : index
    %86 = vector.load %arg9[%c0_35, %c0_36] : memref<1x128xf32, #tpu.memory_space<vmem>>, vector<1x128xf32>
    %87 = vector.broadcast %86 : vector<1x128xf32> to vector<32x128xf32>
    %88 = arith.addf %85, %87 : vector<32x128xf32>
    %89 = arith.addf %74, %88 : vector<32x128xf32>
    %c0_37 = arith.constant 0 : index
    %c0_38 = arith.constant 0 : index
    %90 = vector.load %arg12[%c0_37, %c0_38] : memref<1x128xf32, #tpu.memory_space<vmem>>, vector<1x128xf32>
    %c0_39 = arith.constant 0 : index
    %c0_40 = arith.constant 0 : index
    %91 = vector.load %arg13[%c0_39, %c0_40] : memref<1x128xf32, #tpu.memory_space<vmem>>, vector<1x128xf32>
    %cst_41 = arith.constant dense<0.000000e+00> : vector<32xf32>
    %92 = vector.multi_reduction <add>, %89, %cst_41 [1] : vector<32x128xf32> to vector<32xf32>
    %93 = vector.shape_cast %92 : vector<32xf32> to vector<32x1xf32>
    %cst_42 = arith.constant 3.125000e-02 : f32
    %94 = vector.broadcast %cst_42 : f32 to vector<32x1xf32>
    %95 = arith.mulf %93, %94 : vector<32x1xf32>
    %96 = vector.broadcast %95 : vector<32x1xf32> to vector<32x128xf32>
    %97 = arith.subf %89, %96 : vector<32x128xf32>
    %cst_43 = arith.constant 0.000000e+00 : f32
    %98 = vector.shape_cast %3 : vector<1x128xi1> to vector<1x128xi1>
    %99 = vector.broadcast %98 : vector<1x128xi1> to vector<32x128xi1>
    %100 = vector.broadcast %cst_43 : f32 to vector<32x128xf32>
    %101 = arith.select %99, %97, %100 : vector<32x128xi1>, vector<32x128xf32>
    %102 = arith.mulf %101, %101 : vector<32x128xf32>
    %cst_44 = arith.constant dense<0.000000e+00> : vector<32xf32>
    %103 = vector.multi_reduction <add>, %102, %cst_44 [1] : vector<32x128xf32> to vector<32xf32>
    %104 = vector.shape_cast %103 : vector<32xf32> to vector<32x1xf32>
    %cst_45 = arith.constant 3.125000e-02 : f32
    %105 = vector.broadcast %cst_45 : f32 to vector<32x1xf32>
    %106 = arith.mulf %104, %105 : vector<32x1xf32>
    %cst_46 = arith.constant 9.99999974E-6 : f32
    %107 = vector.broadcast %cst_46 : f32 to vector<32x1xf32>
    %108 = arith.addf %106, %107 : vector<32x1xf32>
    %109 = math.rsqrt %108 : vector<32x1xf32>
    %110 = vector.broadcast %109 : vector<32x1xf32> to vector<32x128xf32>
    %111 = arith.mulf %97, %110 : vector<32x128xf32>
    %112 = vector.broadcast %90 : vector<1x128xf32> to vector<32x128xf32>
    %113 = arith.mulf %111, %112 : vector<32x128xf32>
    %114 = vector.broadcast %91 : vector<1x128xf32> to vector<32x128xf32>
    %115 = arith.addf %113, %114 : vector<32x128xf32>
    %c0_47 = arith.constant 0 : index
    %c0_48 = arith.constant 0 : index
    %116 = vector.load %arg14[%c0_47, %c0_48] : memref<32x128xf32, #tpu.memory_space<vmem>>, vector<32x128xf32>
    tpu.vector_store %arg14[%c0_47, %c0_48], %115 {strides = array<i32>} : memref<32x128xf32, #tpu.memory_space<vmem>>, vector<32x128xf32>,
    return
  }
  func.func @transform_0(%arg0: i32) -> (i32, i32) {
    %c0_i32 = arith.constant 0 : i32
    %c0_i32_0 = arith.constant 0 : i32
    return %arg0, %c0_i32 : i32, i32
  }
  func.func @transform_1(%arg0: i32) -> (i32, i32) {
    %c0_i32 = arith.constant 0 : i32
    %c0_i32_0 = arith.constant 0 : i32
    %c0_i32_1 = arith.constant 0 : i32
    return %c0_i32, %c0_i32_0 : i32, i32
  }
  func.func @transform_2(%arg0: i32) -> (i32, i32) {
    %c0_i32 = arith.constant 0 : i32
    %c0_i32_0 = arith.constant 0 : i32
    %c0_i32_1 = arith.constant 0 : i32
    return %c0_i32, %c0_i32_0 : i32, i32
  }
  func.func @transform_3(%arg0: i32) -> (i32, i32) {
    %c0_i32 = arith.constant 0 : i32
    %c0_i32_0 = arith.constant 0 : i32
    %c0_i32_1 = arith.constant 0 : i32
    return %c0_i32, %c0_i32_0 : i32, i32
  }
  func.func @transform_4(%arg0: i32) -> (i32, i32) {
    %c0_i32 = arith.constant 0 : i32
    %c0_i32_0 = arith.constant 0 : i32
    %c0_i32_1 = arith.constant 0 : i32
    return %c0_i32, %c0_i32_0 : i32, i32
  }
  func.func @transform_5(%arg0: i32) -> (i32, i32) {
    %c0_i32 = arith.constant 0 : i32
    %c0_i32_0 = arith.constant 0 : i32
    %c0_i32_1 = arith.constant 0 : i32
    return %c0_i32, %c0_i32_0 : i32, i32
  }
  func.func @transform_6(%arg0: i32) -> (i32, i32) {
    %c0_i32 = arith.constant 0 : i32
    %c0_i32_0 = arith.constant 0 : i32
    %c0_i32_1 = arith.constant 0 : i32
    return %c0_i32, %c0_i32_0 : i32, i32
  }
  func.func @transform_7(%arg0: i32) -> (i32, i32) {
    %c0_i32 = arith.constant 0 : i32
    %c0_i32_0 = arith.constant 0 : i32
    %c0_i32_1 = arith.constant 0 : i32
    return %c0_i32, %c0_i32_0 : i32, i32
  }
  func.func @transform_8(%arg0: i32) -> (i32, i32) {
    %c0_i32 = arith.constant 0 : i32
    %c0_i32_0 = arith.constant 0 : i32
    %c0_i32_1 = arith.constant 0 : i32
    return %c0_i32, %c0_i32_0 : i32, i32
  }
  func.func @transform_9(%arg0: i32) -> (i32, i32) {
    %c0_i32 = arith.constant 0 : i32
    %c0_i32_0 = arith.constant 0 : i32
    %c0_i32_1 = arith.constant 0 : i32
    return %c0_i32, %c0_i32_0 : i32, i32
  }
  func.func @transform_10(%arg0: i32) -> (i32, i32) {
    %c0_i32 = arith.constant 0 : i32
    %c0_i32_0 = arith.constant 0 : i32
    %c0_i32_1 = arith.constant 0 : i32
    return %c0_i32, %c0_i32_0 : i32, i32
  }
  func.func @transform_11(%arg0: i32) -> (i32, i32) {
    %c0_i32 = arith.constant 0 : i32
    %c0_i32_0 = arith.constant 0 : i32
    %c0_i32_1 = arith.constant 0 : i32
    return %c0_i32, %c0_i32_0 : i32, i32
  }
  func.func @transform_12(%arg0: i32) -> (i32, i32) {
    %c0_i32 = arith.constant 0 : i32
    %c0_i32_0 = arith.constant 0 : i32
    %c0_i32_1 = arith.constant 0 : i32
    return %c0_i32, %c0_i32_0 : i32, i32
  }
  func.func @transform_13(%arg0: i32) -> (i32, i32) {
    %c0_i32 = arith.constant 0 : i32
    %c0_i32_0 = arith.constant 0 : i32
    return %arg0, %c0_i32 : i32, i32
  }
}

</mosaic_0001>

<llo_original>
// kernel: tpu_custom_call.1
$region0: #{tpu_custom_call.1}
  #allocation0 [shape = 'u32[]', space=smem, size = 0x4, offset = 0x4, fixed_abs, tag = 'smem constant byte address 0x4 - core index']
  #allocation1 [shape = 'u32[144,128]{1,0:T(1,128)}', space=vmem, size = 0x12000, scoped, tag = 'internal scratch']
  %s0 = inlined_call_operand.hbm [shape: f32[8,128], index: 0, kind: input, shape index: {}]
  %s1 = inlined_call_operand.hbm [shape: f32[8,128], index: 1, kind: input, shape index: {}]
  %s2 = inlined_call_operand.hbm [shape: f32[8,128], index: 2, kind: output, shape index: {}]
  %s3 = sld [smem:[#allocation0]]
  $region26: #{tpu_custom_call.1} parent=0
    _
  %s5 = ssub.s32 1, %s3
  %s6 = scalar_select 0, %s5, %s3
  $region1: #{tpu_custom_call.1} parent=0
    #allocation2 [shape = 'u8[4096]{0}', space=vmem, size = 0x1000, scoped, tag = 'input window, operand 0, single buffered']
    #allocation3 [shape = 's32[1]{0}', space=sflag, size = 0x4, scoped, tag = 'scoped memory for tpu_custom_call.1']
    #allocation4 [shape = 's32[1]{0}', space=sflag, size = 0x4, scoped, tag = 'scoped memory for tpu_custom_call.1']
    #allocation5 [shape = 'u8[4096]{0}', space=vmem, size = 0x1000, scoped, tag = 'input window, operand 1, single buffered']
    #allocation6 [shape = 's32[1]{0}', space=sflag, size = 0x4, scoped, tag = 'scoped memory for tpu_custom_call.1']
    #allocation7 [shape = 'u8[4096]{0}', space=vmem, size = 0x1000, scoped, tag = 'output window, operand 0, single buffered']
    %7 = vsyncpa [#allocation3], 0
    %8 = vsyncpa [#allocation6], 0
    %9 = vsyncpa [#allocation4], 0
    // Predicated region
    $region2: #{tpu_custom_call.1} parent=1 // pred_check
      _
    $region3: #{tpu_custom_call.1} parent=1 // pred_check_branch
      %11 = sbr.rel (0) target = $region5
    $region4: #{tpu_custom_call.1} parent=1 // pred_region
      %s13 = ssub.s32 128, 128
      %14 = vsyncadd [#allocation3], %s13
      %s16 = sshll.u32 [#allocation2], 4
      %s17 = int_to_ptr.vmem [resolvable:$true] %s16
      %19 = dma.hbm_to_vmem [thread:$0]  %s0, 128, %s17, [#allocation3]
    $region5: #{tpu_custom_call.1} parent=1 // pred_fallthru
      _
    // Predicated region
    $region6: #{tpu_custom_call.1} parent=1 // pred_check
      _
    $region7: #{tpu_custom_call.1} parent=1 // pred_check_branch
      %21 = sbr.rel (0) target = $region9
    $region8: #{tpu_custom_call.1} parent=1 // pred_region
      %s23 = ssub.s32 128, 128
      %24 = vsyncadd [#allocation6], %s23
      %s26 = sshll.u32 [#allocation5], 4
      %s27 = int_to_ptr.vmem [resolvable:$true] %s26
      %29 = dma.hbm_to_vmem [thread:$0]  %s1, 128, %s27, [#allocation6]
    $region9: #{tpu_custom_call.1} parent=1 // pred_fallthru
      _
    // Predicated region
    $region10: #{tpu_custom_call.1} parent=1 // pred_check
      _
    $region11: #{tpu_custom_call.1} parent=1 // pred_check_branch
      %31 = sbr.rel (0) target = $region13
    $region12: #{tpu_custom_call.1} parent=1 // pred_region
      %32 = dma.done [#allocation3], 128
    $region13: #{tpu_custom_call.1} parent=1 // pred_fallthru
      _
    // Predicated region
    $region14: #{tpu_custom_call.1} parent=1 // pred_check
      _
    $region15: #{tpu_custom_call.1} parent=1 // pred_check_branch
      %34 = sbr.rel (0) target = $region17
    $region16: #{tpu_custom_call.1} parent=1 // pred_region
      %35 = dma.done [#allocation6], 128
    $region17: #{tpu_custom_call.1} parent=1 // pred_fallthru
      _
    %v36 = vld [vmem:[#allocation2] sm:$0xff]
    %v37 = vld [vmem:[#allocation5] sm:$0xff]
    %v38 = vadd.f32 %v36, %v37
    %39 = vst [vmem:[#allocation7] sm:$0xff] %v38
    // Predicated region
    $region18: #{tpu_custom_call.1} parent=1 // pred_check
      _
    $region19: #{tpu_custom_call.1} parent=1 // pred_check_branch
      %41 = sbr.rel (0) target = $region21
    $region20: #{tpu_custom_call.1} parent=1 // pred_region
      %s43 = ssub.s32 128, 128
      %44 = vsyncadd [#allocation4], %s43
      %s46 = sshll.u32 [#allocation7], 4
      %s47 = int_to_ptr.vmem [resolvable:$true] %s46
      %49 = dma.vmem_to_hbm [thread:$0]  %s47, 128, %s2, [#allocation4]
    $region21: #{tpu_custom_call.1} parent=1 // pred_fallthru
      _
    // Predicated region
    $region22: #{tpu_custom_call.1} parent=1 // pred_check
      _
    $region23: #{tpu_custom_call.1} parent=1 // pred_check_branch
      %51 = sbr.rel (0) target = $region25
    $region24: #{tpu_custom_call.1} parent=1 // pred_region
      %52 = dma.done [#allocation4], 128
    $region25: #{tpu_custom_call.1} parent=1 // pred_fallthru
      _
    %53 = vsyncpa [#allocation3], 1
    %54 = vsyncpa [#allocation6], 1
    %55 = vsyncpa [#allocation4], 1

// kernel: tpu_custom_call.1
$region0: #{tpu_custom_call.1}
  #allocation0 [shape = 'u32[]', space=smem, size = 0x4, offset = 0x4, fixed_abs, tag = 'smem constant byte address 0x4 - core index']
  #allocation1 [shape = 'u32[144,128]{1,0:T(1,128)}', space=vmem, size = 0x12000, scoped, tag = 'internal scratch']
  %s0 = inlined_call_operand.hbm [shape: f32[64,128], index: 0, kind: input, shape index: {}]
  %s1 = inlined_call_operand.hbm [shape: bf16[128,384], index: 1, kind: input, shape index: {}]
  %s2 = inlined_call_operand.vmem [shape: f32[1,384], index: 2, kind: input, shape index: {}]
  %s3 = inlined_call_operand.hbm [shape: bf16[128,128], index: 3, kind: input, shape index: {}]
  %s4 = inlined_call_operand.vmem [shape: f32[1,128], index: 4, kind: input, shape index: {}]
  %s5 = inlined_call_operand.hbm [shape: bf16[128,128], index: 5, kind: input, shape index: {}]
  %s6 = inlined_call_operand.vmem [shape: f32[1,128], index: 6, kind: input, shape index: {}]
  %s7 = inlined_call_operand.hbm [shape: bf16[128,128], index: 7, kind: input, shape index: {}]
  %s8 = inlined_call_operand.vmem [shape: f32[1,128], index: 8, kind: input, shape index: {}]
  %s9 = inlined_call_operand.vmem [shape: f32[1,128], index: 9, kind: input, shape index: {}]
  %s10 = inlined_call_operand.vmem [shape: f32[1,128], index: 10, kind: input, shape index: {}]
  %s11 = inlined_call_operand.vmem [shape: f32[1,128], index: 11, kind: input, shape index: {}]
  %s12 = inlined_call_operand.vmem [shape: f32[1,128], index: 12, kind: input, shape index: {}]
  %s13 = inlined_call_operand.hbm [shape: f32[64,128], index: 13, kind: output, shape index: {}]
  %s14 = sld [smem:[#allocation0]]
  $region105: #{tpu_custom_call.1} parent=0
    _
  %s16 = ssub.s32 1, %s14
  %s17 = scalar_select 0, %s16, %s14
  $region1: #{tpu_custom_call.1} parent=0
    #allocation2 [shape = 'u8[32768]{0}', space=vmem, size = 0x8000, scoped, tag = 'input window, operand 0']
    #allocation3 [shape = 's32[2]{0}', space=sflag, size = 0x8, scoped, tag = 'scoped memory for tpu_custom_call.1']
    #allocation4 [shape = 's32[2]{0}', space=sflag, size = 0x8, scoped, tag = 'scoped memory for tpu_custom_call.1']
    #allocation5 [shape = 'u8[98304]{0}', space=vmem, size = 0x18000, scoped, tag = 'input window, operand 1, single buffered']
    #allocation6 [shape = 's32[1]{0}', space=sflag, size = 0x4, scoped, tag = 'scoped memory for tpu_custom_call.1']
    #allocation7 [shape = 'u8[32768]{0}', space=vmem, size = 0x8000, scoped, tag = 'input window, operand 3, single buffered']
    #allocation8 [shape = 'u8[32768]{0}', space=vmem, size = 0x8000, scoped, tag = 'input window, operand 5, single buffered']
    #allocation9 [shape = 's32[1]{0}', space=sflag, size = 0x4, scoped, tag = 'scoped memory for tpu_custom_call.1']
    #allocation10 [shape = 'u8[32768]{0}', space=vmem, size = 0x8000, scoped, tag = 'input window, operand 7, single buffered']
    #allocation11 [shape = 'u8[32768]{0}', space=vmem, size = 0x8000, scoped, tag = 'output window, operand 0']
    %18 = vsyncpa [#allocation3], 0
    %s19 = scalar_lea.sflag [#allocation3], 1
    %20 = vsyncpa %s19, 0
    %21 = vsyncpa [#allocation6], 0
    %22 = vsyncpa [#allocation9], 0
    %23 = vsyncpa [#allocation4], 0
    %s24 = scalar_lea.sflag [#allocation4], 1
    %25 = vsyncpa %s24, 0
    loop: start=0, step=1, limit=4
    $region2: #{tpu_custom_call.1} parent=1 // loop_pre_header
      _
    $region3: #{tpu_custom_call.1} parent=1 // loop_header
      %s27 = sphi 0, %s31
      %p28 = scmp.ge.s32.totalorder %s27, 4
      %s37 = sphi 0, %s39
      %s40 = sphi 0, %s37
      %s41 = sphi 0, %s40
      %s57 = sphi 0, %s41
      %s61 = sphi 0, %s61
      %s63 = sphi 0, %s61
      %s64 = sphi 0, %s63
      %s78 = sphi 0, %s64
      %s82 = sphi 0, %s82
      %s84 = sphi 0, %s82
      %s85 = sphi 0, %s84
      %s99 = sphi 0, %s85
      %s103 = sphi 0, %s103
      %s105 = sphi 0, %s103
      %s106 = sphi 0, %s105
      %s120 = sphi 0, %s106
      %s124 = sphi 0, %s124
      %s126 = sphi 0, %s124
      %s127 = sphi 0, %s126
      %s141 = sphi 0, %s127
      %s145 = sphi 0, %s145
      %s147 = sphi 0, %s145
      %s148 = sphi 0, %s147
      %s162 = sphi 0, %s148
      %s166 = sphi 0, %s166
      %s168 = sphi 0, %s166
      %s169 = sphi 0, %s168
      %s183 = sphi 0, %s169
      %s187 = sphi 0, %s187
      %s189 = sphi 0, %s187
      %s190 = sphi 0, %s189
      %s204 = sphi 0, %s190
      %s208 = sphi 0, %s208
      %s210 = sphi 0, %s208
      %s211 = sphi 0, %s210
      %s225 = sphi 0, %s211
      %s229 = sphi 0, %s229
      %s231 = sphi 0, %s229
      %s232 = sphi 0, %s231
      %s246 = sphi 0, %s232
      %s250 = sphi 0, %s250
      %s252 = sphi 0, %s250
      %s253 = sphi 0, %s252
      %s267 = sphi 0, %s253
      %s271 = sphi 0, %s271
      %s273 = sphi 0, %s271
      %s274 = sphi 0, %s273
      %s288 = sphi 0, %s274
      %s292 = sphi 0, %s292
      %s294 = sphi 0, %s292
      %s295 = sphi 0, %s294
      %s309 = sphi 0, %s295
      %s315 = sphi 0, %s317
      %s318 = sphi 0, %s315
      %s319 = sphi 0, %s318
      %s335 = sphi 0, %s319
    $region4: #{tpu_custom_call.1} parent=1 // loop_header_branch
      %30 = sbr.rel (%p28) target = $region8
    $region5: #{tpu_custom_call.1} parent=1 // loop_body
      %s32 = ssub.s32 %s27, 1
      %s33 = ssub.s32 %s27, 2
      %s34 = sadd.s32 %s27, 1
      %s35 = ssub.s32 %s27, %s34
      %p36 = scmp.eq.s32.totalorder %s35, 0
      %s38 = sadd.s32 %s37, 1
      %s39 = scalar_select %p36, %s37, %s38
      %p42 = pneg %p36
      %p43 = scmp.eq.s32.totalorder %s27, 1
      %p44 = por %p42, %p43
      %p45 = scmp.ne.s32.totalorder %s37, %s40
      %p46 = scmp.eq.s32.totalorder %s27, 0
      %p47 = por %p45, %p46
      %p48 = scmp.ne.s32.totalorder %s37, %s40
      %p49 = scmp.eq.s32.totalorder %s32, 1
      %p50 = por %p48, %p49
      %p51 = scmp.ne.s32.totalorder %s40, %s41
      %p52 = scmp.eq.s32.totalorder %s32, 0
      %p53 = por %p51, %p52
      %p54 = scmp.ne.s32.totalorder %s40, %s41
      %p55 = scmp.eq.s32.totalorder %s33, 1
      %p56 = por %p54, %p55
      %p58 = scmp.ne.s32.totalorder %s41, %s57
      %p59 = scmp.eq.s32.totalorder %s33, 0
      %p60 = por %p58, %p59
      %s62 = sadd.s32 %s61, 1
      %p65 = scmp.eq.s32.totalorder %s27, 1
      %p66 = scmp.ne.s32.totalorder %s61, %s63
      %p67 = scmp.eq.s32.totalorder %s27, 0
      %p68 = por %p66, %p67
      %p69 = scmp.ne.s32.totalorder %s61, %s63
      %p70 = scmp.eq.s32.totalorder %s32, 1
      %p71 = por %p69, %p70
      %p72 = scmp.ne.s32.totalorder %s63, %s64
      %p73 = scmp.eq.s32.totalorder %s32, 0
      %p74 = por %p72, %p73
      %p75 = scmp.ne.s32.totalorder %s63, %s64
      %p76 = scmp.eq.s32.totalorder %s33, 1
      %p77 = por %p75, %p76
      %p79 = scmp.ne.s32.totalorder %s64, %s78
      %p80 = scmp.eq.s32.totalorder %s33, 0
      %p81 = por %p79, %p80
      %s83 = sadd.s32 %s82, 1
      %p86 = scmp.eq.s32.totalorder %s27, 1
      %p87 = scmp.ne.s32.totalorder %s82, %s84
      %p88 = scmp.eq.s32.totalorder %s27, 0
      %p89 = por %p87, %p88
      %p90 = scmp.ne.s32.totalorder %s82, %s84
      %p91 = scmp.eq.s32.totalorder %s32, 1
      %p92 = por %p90, %p91
      %p93 = scmp.ne.s32.totalorder %s84, %s85
      %p94 = scmp.eq.s32.totalorder %s32, 0
      %p95 = por %p93, %p94
      %p96 = scmp.ne.s32.totalorder %s84, %s85
      %p97 = scmp.eq.s32.totalorder %s33, 1
      %p98 = por %p96, %p97
      %p100 = scmp.ne.s32.totalorder %s85, %s99
      %p101 = scmp.eq.s32.totalorder %s33, 0
      %p102 = por %p100, %p101
      %s104 = sadd.s32 %s103, 1
      %p107 = scmp.eq.s32.totalorder %s27, 1
      %p108 = scmp.ne.s32.totalorder %s103, %s105
      %p109 = scmp.eq.s32.totalorder %s27, 0
      %p110 = por %p108, %p109
      %p111 = scmp.ne.s32.totalorder %s103, %s105
      %p112 = scmp.eq.s32.totalorder %s32, 1
      %p113 = por %p111, %p112
      %p114 = scmp.ne.s32.totalorder %s105, %s106
      %p115 = scmp.eq.s32.totalorder %s32, 0
      %p116 = por %p114, %p115
      %p117 = scmp.ne.s32.totalorder %s105, %s106
      %p118 = scmp.eq.s32.totalorder %s33, 1
      %p119 = por %p117, %p118
      %p121 = scmp.ne.s32.totalorder %s106, %s120
      %p122 = scmp.eq.s32.totalorder %s33, 0
      %p123 = por %p121, %p122
      %s125 = sadd.s32 %s124, 1
      %p128 = scmp.eq.s32.totalorder %s27, 1
      %p129 = scmp.ne.s32.totalorder %s124, %s126
      %p130 = scmp.eq.s32.totalorder %s27, 0
      %p131 = por %p129, %p130
      %p132 = scmp.ne.s32.totalorder %s124, %s126
      %p133 = scmp.eq.s32.totalorder %s32, 1
      %p134 = por %p132, %p133
      %p135 = scmp.ne.s32.totalorder %s126, %s127
      %p136 = scmp.eq.s32.totalorder %s32, 0
      %p137 = por %p135, %p136
      %p138 = scmp.ne.s32.totalorder %s126, %s127
      %p139 = scmp.eq.s32.totalorder %s33, 1
      %p140 = por %p138, %p139
      %p142 = scmp.ne.s32.totalorder %s127, %s141
      %p143 = scmp.eq.s32.totalorder %s33, 0
      %p144 = por %p142, %p143
      %s146 = sadd.s32 %s145, 1
      %p149 = scmp.eq.s32.totalorder %s27, 1
      %p150 = scmp.ne.s32.totalorder %s145, %s147
      %p151 = scmp.eq.s32.totalorder %s27, 0
      %p152 = por %p150, %p151
      %p153 = scmp.ne.s32.totalorder %s145, %s147
      %p154 = scmp.eq.s32.totalorder %s32, 1
      %p155 = por %p153, %p154
      %p156 = scmp.ne.s32.totalorder %s147, %s148
      %p157 = scmp.eq.s32.totalorder %s32, 0
      %p158 = por %p156, %p157
      %p159 = scmp.ne.s32.totalorder %s147, %s148
      %p160 = scmp.eq.s32.totalorder %s33, 1
      %p161 = por %p159, %p160
      %p163 = scmp.ne.s32.totalorder %s148, %s162
      %p164 = scmp.eq.s32.totalorder %s33, 0
      %p165 = por %p163, %p164
      %s167 = sadd.s32 %s166, 1
      %p170 = scmp.eq.s32.totalorder %s27, 1
      %p171 = scmp.ne.s32.totalorder %s166, %s168
      %p172 = scmp.eq.s32.totalorder %s27, 0
      %p173 = por %p171, %p172
      %p174 = scmp.ne.s32.totalorder %s166, %s168
      %p175 = scmp.eq.s32.totalorder %s32, 1
      %p176 = por %p174, %p175
      %p177 = scmp.ne.s32.totalorder %s168, %s169
      %p178 = scmp.eq.s32.totalorder %s32, 0
      %p179 = por %p177, %p178
      %p180 = scmp.ne.s32.totalorder %s168, %s169
      %p181 = scmp.eq.s32.totalorder %s33, 1
      %p182 = por %p180, %p181
      %p184 = scmp.ne.s32.totalorder %s169, %s183
      %p185 = scmp.eq.s32.totalorder %s33, 0
      %p186 = por %p184, %p185
      %s188 = sadd.s32 %s187, 1
      %p191 = scmp.eq.s32.totalorder %s27, 1
      %p192 = scmp.ne.s32.totalorder %s187, %s189
      %p193 = scmp.eq.s32.totalorder %s27, 0
      %p194 = por %p192, %p193
      %p195 = scmp.ne.s32.totalorder %s187, %s189
      %p196 = scmp.eq.s32.totalorder %s32, 1
      %p197 = por %p195, %p196
      %p198 = scmp.ne.s32.totalorder %s189, %s190
      %p199 = scmp.eq.s32.totalorder %s32, 0
      %p200 = por %p198, %p199
      %p201 = scmp.ne.s32.totalorder %s189, %s190
      %p202 = scmp.eq.s32.totalorder %s33, 1
      %p203 = por %p201, %p202
      %p205 = scmp.ne.s32.totalorder %s190, %s204
      %p206 = scmp.eq.s32.totalorder %s33, 0
      %p207 = por %p205, %p206
      %s209 = sadd.s32 %s208, 1
      %p212 = scmp.eq.s32.totalorder %s27, 1
      %p213 = scmp.ne.s32.totalorder %s208, %s210
      %p214 = scmp.eq.s32.totalorder %s27, 0
      %p215 = por %p213, %p214
      %p216 = scmp.ne.s32.totalorder %s208, %s210
      %p217 = scmp.eq.s32.totalorder %s32, 1
      %p218 = por %p216, %p217
      %p219 = scmp.ne.s32.totalorder %s210, %s211
      %p220 = scmp.eq.s32.totalorder %s32, 0
      %p221 = por %p219, %p220
      %p222 = scmp.ne.s32.totalorder %s210, %s211
      %p223 = scmp.eq.s32.totalorder %s33, 1
      %p224 = por %p222, %p223
      %p226 = scmp.ne.s32.totalorder %s211, %s225
      %p227 = scmp.eq.s32.totalorder %s33, 0
      %p228 = por %p226, %p227
      %s230 = sadd.s32 %s229, 1
      %p233 = scmp.eq.s32.totalorder %s27, 1
      %p234 = scmp.ne.s32.totalorder %s229, %s231
      %p235 = scmp.eq.s32.totalorder %s27, 0
      %p236 = por %p234, %p235
      %p237 = scmp.ne.s32.totalorder %s229, %s231
      %p238 = scmp.eq.s32.totalorder %s32, 1
      %p239 = por %p237, %p238
      %p240 = scmp.ne.s32.totalorder %s231, %s232
      %p241 = scmp.eq.s32.totalorder %s32, 0
      %p242 = por %p240, %p241
      %p243 = scmp.ne.s32.totalorder %s231, %s232
      %p244 = scmp.eq.s32.totalorder %s33, 1
      %p245 = por %p243, %p244
      %p247 = scmp.ne.s32.totalorder %s232, %s246
      %p248 = scmp.eq.s32.totalorder %s33, 0
      %p249 = por %p247, %p248
      %s251 = sadd.s32 %s250, 1
      %p254 = scmp.eq.s32.totalorder %s27, 1
      %p255 = scmp.ne.s32.totalorder %s250, %s252
      %p256 = scmp.eq.s32.totalorder %s27, 0
      %p257 = por %p255, %p256
      %p258 = scmp.ne.s32.totalorder %s250, %s252
      %p259 = scmp.eq.s32.totalorder %s32, 1
      %p260 = por %p258, %p259
      %p261 = scmp.ne.s32.totalorder %s252, %s253
      %p262 = scmp.eq.s32.totalorder %s32, 0
      %p263 = por %p261, %p262
      %p264 = scmp.ne.s32.totalorder %s252, %s253
      %p265 = scmp.eq.s32.totalorder %s33, 1
      %p266 = por %p264, %p265
      %p268 = scmp.ne.s32.totalorder %s253, %s267
      %p269 = scmp.eq.s32.totalorder %s33, 0
      %p270 = por %p268, %p269
      %s272 = sadd.s32 %s271, 1
      %p275 = scmp.eq.s32.totalorder %s27, 1
      %p276 = scmp.ne.s32.totalorder %s271, %s273
      %p277 = scmp.eq.s32.totalorder %s27, 0
      %p278 = por %p276, %p277
      %p279 = scmp.ne.s32.totalorder %s271, %s273
      %p280 = scmp.eq.s32.totalorder %s32, 1
      %p281 = por %p279, %p280
      %p282 = scmp.ne.s32.totalorder %s273, %s274
      %p283 = scmp.eq.s32.totalorder %s32, 0
      %p284 = por %p282, %p283
      %p285 = scmp.ne.s32.totalorder %s273, %s274
      %p286 = scmp.eq.s32.totalorder %s33, 1
      %p287 = por %p285, %p286
      %p289 = scmp.ne.s32.totalorder %s274, %s288
      %p290 = scmp.eq.s32.totalorder %s33, 0
      %p291 = por %p289, %p290
      %s293 = sadd.s32 %s292, 1
      %p296 = scmp.eq.s32.totalorder %s27, 1
      %p297 = scmp.ne.s32.totalorder %s292, %s294
      %p298 = scmp.eq.s32.totalorder %s27, 0
      %p299 = por %p297, %p298
      %p300 = scmp.ne.s32.totalorder %s292, %s294
      %p301 = scmp.eq.s32.totalorder %s32, 1
      %p302 = por %p300, %p301
      %p303 = scmp.ne.s32.totalorder %s294, %s295
      %p304 = scmp.eq.s32.totalorder %s32, 0
      %p305 = por %p303, %p304
      %p306 = scmp.ne.s32.totalorder %s294, %s295
      %p307 = scmp.eq.s32.totalorder %s33, 1
      %p308 = por %p306, %p307
      %p310 = scmp.ne.s32.totalorder %s295, %s309
      %p311 = scmp.eq.s32.totalorder %s33, 0
      %p312 = por %p310, %p311
      %s313 = ssub.s32 %s27, %s34
      %p314 = scmp.eq.s32.totalorder %s313, 0
      %s316 = sadd.s32 %s315, 1
      %s317 = scalar_select %p314, %s315, %s316
      %p320 = pneg %p314
      %p321 = scmp.eq.s32.totalorder %s27, 1
      %p322 = por %p320, %p321
      %p323 = scmp.ne.s32.totalorder %s315, %s318
      %p324 = scmp.eq.s32.totalorder %s27, 0
      %p325 = por %p323, %p324
      %p326 = scmp.ne.s32.totalorder %s315, %s318
      %p327 = scmp.eq.s32.totalorder %s32, 1
      %p328 = por %p326, %p327
      %p329 = scmp.ne.s32.totalorder %s318, %s319
      %p330 = scmp.eq.s32.totalorder %s32, 0
      %p331 = por %p329, %p330
      %p332 = scmp.ne.s32.totalorder %s318, %s319
      %p333 = scmp.eq.s32.totalorder %s33, 1
      %p334 = por %p332, %p333
      %p336 = scmp.ne.s32.totalorder %s319, %s335
      %p337 = scmp.eq.s32.totalorder %s33, 0
      %p338 = por %p336, %p337
      %p339 = scmp.le.s32.totalorder 1, %s27
      %p340 = scmp.lt.s32.totalorder %s27, 3
      %p341 = pnand %p339, %p340
      %p342 = pneg %p341
      // Predicated region
      $region9: #{tpu_custom_call.1} parent=5 // pred_check
        _
      $region10: #{tpu_custom_call.1} parent=5 // pred_check_branch
        %344 = sbr.rel (%p341) target = $region12
      $region11: #{tpu_custom_call.1} parent=5 // pred_region
        %s345 = ssub.s32 %s27, 1
        // Predicated region
        $region13: #{tpu_custom_call.1} parent=11 // pred_check
          %p346 = pneg %p74
        $region14: #{tpu_custom_call.1} parent=11 // pred_check_branch
          %348 = sbr.rel (%p346) target = $region16
        $region15: #{tpu_custom_call.1} parent=11 // pred_region
          %s350 = ssub.s32 3072, 3072
          %351 = vsyncadd [#allocation6], %s350
          %s352 = sshll.u32 [#allocation5], 4
          %s353 = int_to_ptr.vmem [resolvable:$true] %s352
          %358 = dma.hbm_to_vmem [thread:$0]  %s1, 3072, %s353, [#allocation6], 192, 192, 12
        $region16: #{tpu_custom_call.1} parent=11 // pred_fallthru
          _
        // Predicated region
        $region17: #{tpu_custom_call.1} parent=11 // pred_check
          %p359 = pneg %p95
        $region18: #{tpu_custom_call.1} parent=11 // pred_check_branch
          %361 = sbr.rel (%p359) target = $region20
        $region19: #{tpu_custom_call.1} parent=11 // pred_region
          _
        $region20: #{tpu_custom_call.1} parent=11 // pred_fallthru
          _
        // Predicated region
        $region21: #{tpu_custom_call.1} parent=11 // pred_check
          %p362 = pneg %p116
        $region22: #{tpu_custom_call.1} parent=11 // pred_check_branch
          %364 = sbr.rel (%p362) target = $region24
        $region23: #{tpu_custom_call.1} parent=11 // pred_region
          %s366 = ssub.s32 1024, 1024
          %367 = vsyncadd [#allocation6], %s366
          %s368 = sshll.u32 [#allocation7], 4
          %s369 = int_to_ptr.vmem [resolvable:$true] %s368
          %374 = dma.hbm_to_vmem [thread:$0]  %s3, 1024, %s369, [#allocation6], 64, 64, 4
        $region24: #{tpu_custom_call.1} parent=11 // pred_fallthru
          _
        // Predicated region
        $region25: #{tpu_custom_call.1} parent=11 // pred_check
          %p375 = pneg %p137
        $region26: #{tpu_custom_call.1} parent=11 // pred_check_branch
          %377 = sbr.rel (%p375) target = $region28
        $region27: #{tpu_custom_call.1} parent=11 // pred_region
          _
        $region28: #{tpu_custom_call.1} parent=11 // pred_fallthru
          _
        // Predicated region
        $region29: #{tpu_custom_call.1} parent=11 // pred_check
          %p378 = pneg %p158
        $region30: #{tpu_custom_call.1} parent=11 // pred_check_branch
          %380 = sbr.rel (%p378) target = $region32
        $region31: #{tpu_custom_call.1} parent=11 // pred_region
          %s382 = ssub.s32 1024, 1024
          %383 = vsyncadd [#allocation9], %s382
          %s384 = sshll.u32 [#allocation8], 4
          %s385 = int_to_ptr.vmem [resolvable:$true] %s384
          %390 = dma.hbm_to_vmem [thread:$0]  %s5, 1024, %s385, [#allocation9], 64, 64, 4
        $region32: #{tpu_custom_call.1} parent=11 // pred_fallthru
          _
        // Predicated region
        $region33: #{tpu_custom_call.1} parent=11 // pred_check
          %p391 = pneg %p179
        $region34: #{tpu_custom_call.1} parent=11 // pred_check_branch
          %393 = sbr.rel (%p391) target = $region36
        $region35: #{tpu_custom_call.1} parent=11 // pred_region
          _
        $region36: #{tpu_custom_call.1} parent=11 // pred_fallthru
          _
        // Predicated region
        $region37: #{tpu_custom_call.1} parent=11 // pred_check
          %p394 = pneg %p200
        $region38: #{tpu_custom_call.1} parent=11 // pred_check_branch
          %396 = sbr.rel (%p394) target = $region40
        $region39: #{tpu_custom_call.1} parent=11 // pred_region
          %s398 = ssub.s32 1024, 1024
          %399 = vsyncadd [#allocation9], %s398
          %s400 = sshll.u32 [#allocation10], 4
          %s401 = int_to_ptr.vmem [resolvable:$true] %s400
          %406 = dma.hbm_to_vmem [thread:$0]  %s7, 1024, %s401, [#allocation9], 64, 64, 4
        $region40: #{tpu_custom_call.1} parent=11 // pred_fallthru
          _
        // Predicated region
        $region41: #{tpu_custom_call.1} parent=11 // pred_check
          %p407 = pneg %p221
        $region42: #{tpu_custom_call.1} parent=11 // pred_check_branch
          %409 = sbr.rel (%p407) target = $region44
        $region43: #{tpu_custom_call.1} parent=11 // pred_region
          _
        $region44: #{tpu_custom_call.1} parent=11 // pred_fallthru
          _
        // Predicated region
        $region45: #{tpu_custom_call.1} parent=11 // pred_check
          %p410 = pneg %p242
        $region46: #{tpu_custom_call.1} parent=11 // pred_check_branch
          %412 = sbr.rel (%p410) target = $region48
        $region47: #{tpu_custom_call.1} parent=11 // pred_region
          _
        $region48: #{tpu_custom_call.1} parent=11 // pred_fallthru
          _
        // Predicated region
        $region49: #{tpu_custom_call.1} parent=11 // pred_check
          %p413 = pneg %p263
        $region50: #{tpu_custom_call.1} parent=11 // pred_check_branch
          %415 = sbr.rel (%p413) target = $region52
        $region51: #{tpu_custom_call.1} parent=11 // pred_region
          _
        $region52: #{tpu_custom_call.1} parent=11 // pred_fallthru
          _
        // Predicated region
        $region53: #{tpu_custom_call.1} parent=11 // pred_check
          %p416 = pneg %p284
        $region54: #{tpu_custom_call.1} parent=11 // pred_check_branch
          %418 = sbr.rel (%p416) target = $region56
        $region55: #{tpu_custom_call.1} parent=11 // pred_region
          _
        $region56: #{tpu_custom_call.1} parent=11 // pred_fallthru
          _
        // Predicated region
        $region57: #{tpu_custom_call.1} parent=11 // pred_check
          %p419 = pneg %p305
        $region58: #{tpu_custom_call.1} parent=11 // pred_check_branch
          %421 = sbr.rel (%p419) target = $region60
        $region59: #{tpu_custom_call.1} parent=11 // pred_region
          _
        $region60: #{tpu_custom_call.1} parent=11 // pred_fallthru
          _
      $region12: #{tpu_custom_call.1} parent=5 // pred_fallthru
        _
      %p422 = scmp.lt.s32.totalorder %s27, 2
      // Predicated region
      $region61: #{tpu_custom_call.1} parent=5 // pred_check
        %p423 = pneg %p422
      $region62: #{tpu_custom_call.1} parent=5 // pred_check_branch
        %425 = sbr.rel (%p423) target = $region64
      $region63: #{tpu_custom_call.1} parent=5 // pred_region
        // Predicated region
        $region65: #{tpu_custom_call.1} parent=63 // pred_check
          %p426 = pneg %p47
        $region66: #{tpu_custom_call.1} parent=63 // pred_check_branch
          %428 = sbr.rel (%p426) target = $region68
        $region67: #{tpu_custom_call.1} parent=63 // pred_region
          %s429 = sand.u32 %s37, 1
          %s430 = scalar_lea.sflag [#allocation3], %s429
          %s431 = sand.u32 %s37, 1
          %s432 = smul.addr %s431, 32
          %s433 = scalar_lea.vmem [#allocation2], %s432
          %s434 = smul.u32 4, %s27
          %s436 = ssub.s32 512, 512
          %437 = vsyncadd %s430, %s436
          %s438 = smul.addr %s434, 128
          %s439 = scalar_lea.hbm %s0, %s438
          %s440 = sshll.u32 %s433, 4
          %s441 = int_to_ptr.vmem [resolvable:$true] %s440
          %446 = dma.hbm_to_vmem [thread:$0]  %s439, 512, %s441, %s430, 128, 128, 8
        $region68: #{tpu_custom_call.1} parent=63 // pred_fallthru
          _
      $region64: #{tpu_custom_call.1} parent=5 // pred_fallthru
        _
      %p447 = scmp.le.s32.totalorder 1, %s27
      %p448 = scmp.lt.s32.totalorder %s27, 3
      %p449 = pnand %p447, %p448
      %p450 = pneg %p449
      // Predicated region
      $region69: #{tpu_custom_call.1} parent=5 // pred_check
        _
      $region70: #{tpu_custom_call.1} parent=5 // pred_check_branch
        %452 = sbr.rel (%p449) target = $region72
      $region71: #{tpu_custom_call.1} parent=5 // pred_region
        %s453 = ssub.s32 %s27, 1
        %s454 = sand.u32 %s40, 1
        %s455 = scalar_lea.sflag [#allocation3], %s454
        %s456 = sand.u32 %s40, 1
        %s457 = smul.addr %s456, 32
        %s458 = scalar_lea.vmem [#allocation2], %s457
        // Predicated region
        $region73: #{tpu_custom_call.1} parent=71 // pred_check
          %p459 = pneg %p53
        $region74: #{tpu_custom_call.1} parent=71 // pred_check_branch
          %461 = sbr.rel (%p459) target = $region76
        $region75: #{tpu_custom_call.1} parent=71 // pred_region
          %462 = dma.done %s455, 512
        $region76: #{tpu_custom_call.1} parent=71 // pred_fallthru
          _
        // Predicated region
        $region77: #{tpu_custom_call.1} parent=71 // pred_check
          %p463 = pneg %p74
        $region78: #{tpu_custom_call.1} parent=71 // pred_check_branch
          %465 = sbr.rel (%p463) target = $region80
        $region79: #{tpu_custom_call.1} parent=71 // pred_region
          %466 = dma.done [#allocation6], 3072
        $region80: #{tpu_custom_call.1} parent=71 // pred_fallthru
          _
        // Predicated region
        $region81: #{tpu_custom_call.1} parent=71 // pred_check
          %p467 = pneg %p116
        $region82: #{tpu_custom_call.1} parent=71 // pred_check_branch
          %469 = sbr.rel (%p467) target = $region84
        $region83: #{tpu_custom_call.1} parent=71 // pred_region
          %470 = dma.done [#allocation6], 1024
        $region84: #{tpu_custom_call.1} parent=71 // pred_fallthru
          _
        // Predicated region
        $region85: #{tpu_custom_call.1} parent=71 // pred_check
          %p471 = pneg %p158
        $region86: #{tpu_custom_call.1} parent=71 // pred_check_branch
          %473 = sbr.rel (%p471) target = $region88
        $region87: #{tpu_custom_call.1} parent=71 // pred_region
          %474 = dma.done [#allocation9], 1024
        $region88: #{tpu_custom_call.1} parent=71 // pred_fallthru
          _
        // Predicated region
        $region89: #{tpu_custom_call.1} parent=71 // pred_check
          %p475 = pneg %p200
        $region90: #{tpu_custom_call.1} parent=71 // pred_check_branch
          %477 = sbr.rel (%p475) target = $region92
        $region91: #{tpu_custom_call.1} parent=71 // pred_region
          %478 = dma.done [#allocation9], 1024
        $region92: #{tpu_custom_call.1} parent=71 // pred_fallthru
          _
        %s479 = sand.u32 %s40, 1
        %s480 = scalar_lea.sflag [#allocation3], %s479
        %s481 = sand.u32 %s40, 1
        %s482 = smul.addr %s481, 32
        %s483 = scalar_lea.vmem [#allocation2], %s482
        %p484 = pneg %p53
        %p485 = pneg %p50
        %p486 = pneg %p74
        %p487 = pneg %p71
        %p488 = pneg %p95
        %p489 = pneg %p92
        %p490 = pneg %p116
        %p491 = pneg %p113
        %p492 = pneg %p137
        %p493 = pneg %p134
        %p494 = pneg %p158
        %p495 = pneg %p155
        %p496 = pneg %p179
        %p497 = pneg %p176
        %p498 = pneg %p200
        %p499 = pneg %p197
        %p500 = pneg %p221
        %p501 = pneg %p218
        %p502 = pneg %p242
        %p503 = pneg %p239
        %p504 = pneg %p263
        %p505 = pneg %p260
        %p506 = pneg %p284
        %p507 = pneg %p281
        %p508 = pneg %p305
        %p509 = pneg %p302
        %p510 = pneg %p331
        %p511 = pneg %p328
        %s512 = sand.u32 %s318, 1
        %s513 = scalar_lea.sflag [#allocation4], %s512
        %s514 = sand.u32 %s318, 1
        %s515 = smul.addr %s514, 32
        %s516 = scalar_lea.vmem [#allocation11], %s515
        %s517 = smul.u32 4, %s32
        %s518 = smul.u32 4, %s32
        %v520 = vld [vmem:[%s458] sm:$0xff]
        %v521 = vld [vmem:[%s458 + $0x8] sm:$0xff]
        %v522 = vld [vmem:[%s458 + $0x10] sm:$0xff]
        %v523 = vld [vmem:[%s458 + $0x18] sm:$0xff]
        %v524 = vlaneseq
        %v525 = vand.u32 %v524, 127
        %vm526 = vcmp.lt.s32.totalorder %v525, 32
        %v527 = vpack.c.bf16 %v521, %v520
        %v528 = vpack.c.bf16 %v523, %v522
        %v529 = vld [vmem:[#allocation5] sm:$0xff]
        %v530 = vld [vmem:[#allocation5 + $0x8] sm:$0xf]
        %v531 = vld [vmem:[#allocation5 + $0xc] sm:$0xff]
        %v532 = vld [vmem:[#allocation5 + $0x14] sm:$0xf]
        %v533 = vld [vmem:[#allocation5 + $0x18] sm:$0xff]
        %v534 = vld [vmem:[#allocation5 + $0x20] sm:$0xf]
        %v535 = vld [vmem:[#allocation5 + $0x24] sm:$0xff]
        %v536 = vld [vmem:[#allocation5 + $0x2c] sm:$0xf]
        %v537 = vld [vmem:[#allocation5 + $0x30] sm:$0xff]
        %v538 = vld [vmem:[#allocation5 + $0x38] sm:$0xf]
        %v539 = vld [vmem:[#allocation5 + $0x3c] sm:$0xff]
        %v540 = vld [vmem:[#allocation5 + $0x44] sm:$0xf]
        %v541 = vld [vmem:[#allocation5 + $0x48] sm:$0xff]
        %v542 = vld [vmem:[#allocation5 + $0x50] sm:$0xf]
        %v543 = vld [vmem:[#allocation5 + $0x54] sm:$0xff]
        %v544 = vld [vmem:[#allocation5 + $0x5c] sm:$0xf]
        %v545 = vld [vmem:[#allocation5 + $0x60] sm:$0xff]
        %v546 = vld [vmem:[#allocation5 + $0x68] sm:$0xf]
        %v547 = vld [vmem:[#allocation5 + $0x6c] sm:$0xff]
        %v548 = vld [vmem:[#allocation5 + $0x74] sm:$0xf]
        %v549 = vld [vmem:[#allocation5 + $0x78] sm:$0xff]
        %v550 = vld [vmem:[#allocation5 + $0x80] sm:$0xf]
        %v551 = vld [vmem:[#allocation5 + $0x84] sm:$0xff]
        %v552 = vld [vmem:[#allocation5 + $0x8c] sm:$0xf]
        %v553 = vld [vmem:[#allocation5 + $0x90] sm:$0xff]
        %v554 = vld [vmem:[#allocation5 + $0x98] sm:$0xf]
        %v555 = vld [vmem:[#allocation5 + $0x9c] sm:$0xff]
        %v556 = vld [vmem:[#allocation5 + $0xa4] sm:$0xf]
        %v557 = vld [vmem:[#allocation5 + $0xa8] sm:$0xff]
        %v558 = vld [vmem:[#allocation5 + $0xb0] sm:$0xf]
        %v559 = vld [vmem:[#allocation5 + $0xb4] sm:$0xff]
        %v560 = vld [vmem:[#allocation5 + $0xbc] sm:$0xf]
        %v561 = vld [vmem:[%s2] sm:$0x7]
        %v563 = vlaneseq
        %v564 = vshrl.u32 %v563, 7
        %v565 = vsub.s32 0, %v564
        %v566 = vrot.slane %v561, %v565
        %v567 = vlaneseq
        %v568 = vshrl.u32 %v567, 7
        %v569 = vsub.s32 1, %v568
        %v570 = vrot.slane %v561, %v569
        %v571 = vlaneseq
        %v572 = vshrl.u32 %v571, 7
        %v573 = vsub.s32 2, %v572
        %v574 = vrot.slane %v561, %v573
        %v610 = vunpack.c.l.b16 %v529
        %v611 = vunpack.c.h.b16 %v529
        %v612 = vunpack.c.l.b16 %v530
        %v613 = vunpack.c.l.b16 %v531
        %v614 = vunpack.c.h.b16 %v531
        %v615 = vunpack.c.l.b16 %v532
        %v616 = vunpack.c.l.b16 %v533
        %v617 = vunpack.c.h.b16 %v533
        %v618 = vunpack.c.l.b16 %v534
        %v619 = vunpack.c.l.b16 %v535
        %v620 = vunpack.c.h.b16 %v535
        %v621 = vunpack.c.l.b16 %v536
        %v622 = vunpack.c.l.b16 %v537
        %v623 = vunpack.c.h.b16 %v537
        %v624 = vunpack.c.l.b16 %v538
        %v625 = vunpack.c.l.b16 %v539
        %v626 = vunpack.c.h.b16 %v539
        %v627 = vunpack.c.l.b16 %v540
        %v628 = vunpack.c.l.b16 %v541
        %v629 = vunpack.c.h.b16 %v541
        %v630 = vunpack.c.l.b16 %v542
        %v631 = vunpack.c.l.b16 %v543
        %v632 = vunpack.c.h.b16 %v543
        %v633 = vunpack.c.l.b16 %v544
        %v634 = vunpack.c.l.b16 %v545
        %v635 = vunpack.c.h.b16 %v545
        %v636 = vunpack.c.l.b16 %v546
        %v637 = vunpack.c.l.b16 %v547
        %v638 = vunpack.c.h.b16 %v547
        %v639 = vunpack.c.l.b16 %v548
        %v640 = vunpack.c.l.b16 %v549
        %v641 = vunpack.c.h.b16 %v549
        %v642 = vunpack.c.l.b16 %v550
        %v643 = vunpack.c.l.b16 %v551
        %v644 = vunpack.c.h.b16 %v551
        %v645 = vunpack.c.l.b16 %v552
        %v646 = vunpack.c.l.b16 %v553
        %v647 = vunpack.c.h.b16 %v553
        %v648 = vunpack.c.l.b16 %v554
        %v649 = vunpack.c.l.b16 %v555
        %v650 = vunpack.c.h.b16 %v555
        %v651 = vunpack.c.l.b16 %v556
        %v652 = vunpack.c.l.b16 %v557
        %v653 = vunpack.c.h.b16 %v557
        %v654 = vunpack.c.l.b16 %v558
        %v655 = vunpack.c.l.b16 %v559
        %v656 = vunpack.c.h.b16 %v559
        %v657 = vunpack.c.l.b16 %v560
        %v658 = vpack.c.b16 %v613, %v610
        %v659 = vpack.c.b16 %v614, %v611
        %v660 = vpack.c.b16 %v615, %v612
        %v661 = vpack.c.b16 %v619, %v616
        %v662 = vpack.c.b16 %v620, %v617
        %v663 = vpack.c.b16 %v621, %v618
        %v664 = vpack.c.b16 %v625, %v622
        %v665 = vpack.c.b16 %v626, %v623
        %v666 = vpack.c.b16 %v627, %v624
        %v667 = vpack.c.b16 %v631, %v628
        %v668 = vpack.c.b16 %v632, %v629
        %v669 = vpack.c.b16 %v633, %v630
        %v670 = vpack.c.b16 %v637, %v634
        %v671 = vpack.c.b16 %v638, %v635
        %v672 = vpack.c.b16 %v639, %v636
        %v673 = vpack.c.b16 %v643, %v640
        %v674 = vpack.c.b16 %v644, %v641
        %v675 = vpack.c.b16 %v645, %v642
        %v676 = vpack.c.b16 %v649, %v646
        %v677 = vpack.c.b16 %v650, %v647
        %v678 = vpack.c.b16 %v651, %v648
        %v679 = vpack.c.b16 %v655, %v652
        %v680 = vpack.c.b16 %v656, %v653
        %v681 = vpack.c.b16 %v657, %v654
        %706 = vmatprep.subr.bf16.mxu0 %v659
        %707 = vmatpush1.bf16.msra.mxu0 %v658
        %708 = vmatprep.subr.bf16.mxu0 %v662
        %709 = vmatpush1.bf16.msra.mxu0 %v661
        %710 = vmatprep.subr.bf16.mxu0 %v665
        %711 = vmatpush1.bf16.msra.mxu0 %v664
        %712 = vmatprep.subr.bf16.mxu0 %v668
        %713 = vmatpush1.bf16.msra.mxu0 %v667
        %714 = vmatprep.subr.bf16.mxu0 %v671
        %715 = vmatpush1.bf16.msra.mxu0 %v670
        %716 = vmatprep.subr.bf16.mxu0 %v674
        %717 = vmatpush1.bf16.msra.mxu0 %v673
        %718 = vmatprep.subr.bf16.mxu0 %v677
        %719 = vmatpush1.bf16.msra.mxu0 %v676
        %720 = vmatprep.subr.bf16.mxu0 %v680
        %721 = vmatpush1.bf16.msra.mxu0 %v679
        %722 = vmatprep.subr.bf16.mxu0 0
        %723 = vmatpush1.bf16.msra.mxu0 0
        %724 = vmatprep.subr.bf16.mxu0 0
        %725 = vmatpush1.bf16.msra.mxu0 0
        %726 = vmatprep.subr.bf16.mxu0 0
        %727 = vmatpush1.bf16.msra.mxu0 0
        %728 = vmatprep.subr.bf16.mxu0 0
        %729 = vmatpush1.bf16.msra.mxu0 0
        %730 = vmatprep.subr.bf16.mxu0 0
        %731 = vmatpush1.bf16.msra.mxu0 0
        %732 = vmatprep.subr.bf16.mxu0 0
        %733 = vmatpush1.bf16.msra.mxu0 0
        %734 = vmatprep.subr.bf16.mxu0 0
        %735 = vmatpush1.bf16.msra.mxu0 0
        %736 = vmatprep.subr.bf16.mxu0 0
        %737 = vmatpush1.bf16.msra.mxu0 0
        %738 = vmatprep.mubr.bf16.mxu0 0
        %739 = vmatmul.mubr.bf16.gmra.mrb[0].mxu0 %v527
        %v740 = vpop.f32.mrb[0].mxu0
        %v741 = vadd.f32 %v566, %v740
        %v742 = vpop.f32.mrb[0].mxu0
        %v743 = vadd.f32 %v570, %v742
        %v744 = vpop.f32.mrb[0].mxu0
        %v745 = vadd.f32 %v566, %v744
        %v746 = vpop.f32.mrb[0].mxu0
        %v747 = vadd.f32 %v570, %v746
        %748 = vmatprep.mubr.bf16.mxu0 0
        %749 = vmatmul.mubr.bf16.gmra.mrb[0].mxu0 %v528
        %v750 = vpop.f32.mrb[0].mxu0
        %v751 = vadd.f32 %v566, %v750
        %v752 = vpop.f32.mrb[0].mxu0
        %v753 = vadd.f32 %v570, %v752
        %v754 = vpop.f32.mrb[0].mxu0
        %v755 = vadd.f32 %v566, %v754
        %v756 = vpop.f32.mrb[0].mxu0
        %v757 = vadd.f32 %v570, %v756
        %758 = vdwg.mxu0
        %759 = vmatprep.subr.bf16.mxu0 0
        %760 = vmatpush1.bf16.msra.mxu0 %v660
        %761 = vmatprep.subr.bf16.mxu0 0
        %762 = vmatpush1.bf16.msra.mxu0 %v663
        %763 = vmatprep.subr.bf16.mxu0 0
        %764 = vmatpush1.bf16.msra.mxu0 %v666
        %765 = vmatprep.subr.bf16.mxu0 0
        %766 = vmatpush1.bf16.msra.mxu0 %v669
        %767 = vmatprep.subr.bf16.mxu0 0
        %768 = vmatpush1.bf16.msra.mxu0 %v672
        %769 = vmatprep.subr.bf16.mxu0 0
        %770 = vmatpush1.bf16.msra.mxu0 %v675
        %771 = vmatprep.subr.bf16.mxu0 0
        %772 = vmatpush1.bf16.msra.mxu0 %v678
        %773 = vmatprep.subr.bf16.mxu0 0
        %774 = vmatpush1.bf16.msra.mxu0 %v681
        %775 = vmatprep.subr.bf16.mxu0 0
        %776 = vmatpush1.bf16.msra.mxu0 0
        %777 = vmatprep.subr.bf16.mxu0 0
        %778 = vmatpush1.bf16.msra.mxu0 0
        %779 = vmatprep.subr.bf16.mxu0 0
        %780 = vmatpush1.bf16.msra.mxu0 0
        %781 = vmatprep.subr.bf16.mxu0 0
        %782 = vmatpush1.bf16.msra.mxu0 0
        %783 = vmatprep.subr.bf16.mxu0 0
        %784 = vmatpush1.bf16.msra.mxu0 0
        %785 = vmatprep.subr.bf16.mxu0 0
        %786 = vmatpush1.bf16.msra.mxu0 0
        %787 = vmatprep.subr.bf16.mxu0 0
        %788 = vmatpush1.bf16.msra.mxu0 0
        %789 = vmatprep.subr.bf16.mxu0 0
        %790 = vmatpush1.bf16.msra.mxu0 0
        %791 = vmatprep.mubr.bf16.mxu0 0
        %792 = vmatmul.mubr.bf16.gmra.mrb[0].mxu0 %v527
        %v793 = vpop.f32.mrb[0].mxu0
        %v794 = vadd.f32 %v574, %v793
        %v795 = vpop.f32.mrb[0].mxu0
        %v796 = vpop.f32.mrb[0].mxu0
        %v797 = vadd.f32 %v574, %v796
        %v798 = vpop.f32.mrb[0].mxu0
        %799 = vmatprep.mubr.bf16.mxu0 0
        %800 = vmatmul.mubr.bf16.gmra.mrb[0].mxu0 %v528
        %v801 = vpop.f32.mrb[0].mxu0
        %v802 = vadd.f32 %v574, %v801
        %v803 = vpop.f32.mrb[0].mxu0
        %v804 = vpop.f32.mrb[0].mxu0
        %v805 = vadd.f32 %v574, %v804
        %v806 = vpop.f32.mrb[0].mxu0
        %807 = vdwg.mxu0
        %v808 = vpack.c.bf16 %v745, %v741
        %v809 = vpack.c.bf16 %v755, %v751
        %v810 = vpack.c.bf16 %v747, %v743
        %v811 = vpack.c.bf16 %v757, %v753
        %v812 = vpack.c.bf16 %v797, %v794
        %v813 = vpack.c.bf16 %v805, %v802
        %814 = vmatprep.subr.bf16.mxu0 0
        %815 = vmatpush1.bf16.xpose.msra.mxu0 %v810
        %816 = vmatprep.subr.bf16.mxu0 0
        %817 = vmatpush1.bf16.xpose.msra.mxu0 0
        %818 = vmatprep.subr.bf16.mxu0 0
        %819 = vmatpush1.bf16.xpose.msra.mxu0 0
        %820 = vmatprep.subr.bf16.mxu0 0
        %821 = vmatpush1.bf16.xpose.msra.mxu0 0
        %822 = vmatprep.subr.bf16.mxu0 0
        %823 = vmatpush1.bf16.xpose.msra.mxu0 0
        %824 = vmatprep.subr.bf16.mxu0 0
        %825 = vmatpush1.bf16.xpose.msra.mxu0 0
        %826 = vmatprep.subr.bf16.mxu0 0
        %827 = vmatpush1.bf16.xpose.msra.mxu0 0
        %828 = vmatprep.subr.bf16.mxu0 0
        %829 = vmatpush1.bf16.xpose.msra.mxu0 0
        %830 = vmatprep.subr.bf16.mxu0 0
        %831 = vmatpush1.bf16.xpose.msra.mxu0 0
        %832 = vmatprep.subr.bf16.mxu0 0
        %833 = vmatpush1.bf16.xpose.msra.mxu0 0
        %834 = vmatprep.subr.bf16.mxu0 0
        %835 = vmatpush1.bf16.xpose.msra.mxu0 0
        %836 = vmatprep.subr.bf16.mxu0 0
        %837 = vmatpush1.bf16.xpose.msra.mxu0 0
        %838 = vmatprep.subr.bf16.mxu0 0
        %839 = vmatpush1.bf16.xpose.msra.mxu0 0
        %840 = vmatprep.subr.bf16.mxu0 0
        %841 = vmatpush1.bf16.xpose.msra.mxu0 0
        %842 = vmatprep.subr.bf16.mxu0 0
        %843 = vmatpush1.bf16.xpose.msra.mxu0 0
        %844 = vmatprep.subr.bf16.mxu0 0
        %845 = vmatpush1.bf16.xpose.msra.mxu0 0
        %846 = vmatprep.mubr.bf16.mxu0 0
        %847 = vmatmul.mubr.bf16.gmra.mrb[0].mxu0 %v808
        %v848 = vpop.f32.mrb[0].mxu0
        %v849 = vadd.f32 0.0, %v848
        %v850 = vpop.f32.mrb[0].mxu0
        %v851 = vpop.f32.mrb[0].mxu0
        %v852 = vadd.f32 0.0, %v851
        %v853 = vpop.f32.mrb[0].mxu0
        %854 = vdwg.mxu0
        %855 = vmatprep.subr.bf16.mxu0 0
        %856 = vmatpush1.bf16.xpose.msra.mxu0 %v811
        %857 = vmatprep.subr.bf16.mxu0 0
        %858 = vmatpush1.bf16.xpose.msra.mxu0 0
        %859 = vmatprep.subr.bf16.mxu0 0
        %860 = vmatpush1.bf16.xpose.msra.mxu0 0
        %861 = vmatprep.subr.bf16.mxu0 0
        %862 = vmatpush1.bf16.xpose.msra.mxu0 0
        %863 = vmatprep.subr.bf16.mxu0 0
        %864 = vmatpush1.bf16.xpose.msra.mxu0 0
        %865 = vmatprep.subr.bf16.mxu0 0
        %866 = vmatpush1.bf16.xpose.msra.mxu0 0
        %867 = vmatprep.subr.bf16.mxu0 0
        %868 = vmatpush1.bf16.xpose.msra.mxu0 0
        %869 = vmatprep.subr.bf16.mxu0 0
        %870 = vmatpush1.bf16.xpose.msra.mxu0 0
        %871 = vmatprep.subr.bf16.mxu0 0
        %872 = vmatpush1.bf16.xpose.msra.mxu0 0
        %873 = vmatprep.subr.bf16.mxu0 0
        %874 = vmatpush1.bf16.xpose.msra.mxu0 0
        %875 = vmatprep.subr.bf16.mxu0 0
        %876 = vmatpush1.bf16.xpose.msra.mxu0 0
        %877 = vmatprep.subr.bf16.mxu0 0
        %878 = vmatpush1.bf16.xpose.msra.mxu0 0
        %879 = vmatprep.subr.bf16.mxu0 0
        %880 = vmatpush1.bf16.xpose.msra.mxu0 0
        %881 = vmatprep.subr.bf16.mxu0 0
        %882 = vmatpush1.bf16.xpose.msra.mxu0 0
        %883 = vmatprep.subr.bf16.mxu0 0
        %884 = vmatpush1.bf16.xpose.msra.mxu0 0
        %885 = vmatprep.subr.bf16.mxu0 0
        %886 = vmatpush1.bf16.xpose.msra.mxu0 0
        %887 = vmatprep.mubr.bf16.mxu0 0
        %888 = vmatmul.mubr.bf16.gmra.mrb[0].mxu0 %v809
        %v889 = vpop.f32.mrb[0].mxu0
        %v890 = vadd.f32 0.0, %v889
        %v891 = vpop.f32.mrb[0].mxu0
        %v892 = vpop.f32.mrb[0].mxu0
        %v893 = vadd.f32 0.0, %v892
        %v894 = vpop.f32.mrb[0].mxu0
        %895 = vdwg.mxu0
        %v896 = vmul.f32 %v849, 0.17677669
        %v897 = vmul.f32 %v852, 0.17677669
        %v898 = vmul.f32 %v890, 0.17677669
        %v899 = vmul.f32 %v893, 0.17677669
        %vm900 = vcmp.lt.s32.totalorder %v525, 10
        %v901 = vsel %vm900, 1, 0
        %vm902 = vcmp.eq.s32.totalorder %v901, 1
        %v903 = vsel %vm902, %v896, -1e+30
        %v904 = vsel %vm902, %v897, -1e+30
        %v905 = vsel %vm902, %v898, -1e+30
        %v906 = vsel %vm902, %v899, -1e+30
        %vm907 = vcmask 130048
        %v908 = vsel %vm907, %v903, -inf
        %909 = vmax.xlane.f32.xlu0 %v908
        %v910 = vpop.xlane.xlu0 %909
        %v911 = vsel %vm907, %v904, -inf
        %912 = vmax.xlane.f32.xlu0 %v911
        %v913 = vpop.xlane.xlu0 %912
        %v914 = vsel %vm907, %v905, -inf
        %915 = vmax.xlane.f32.xlu0 %v914
        %v916 = vpop.xlane.xlu0 %915
        %v917 = vsel %vm907, %v906, -inf
        %918 = vmax.xlane.f32.xlu0 %v917
        %v919 = vpop.xlane.xlu0 %918
        %v920 = vsub.f32 %v903, %v910
        %v921 = vsub.f32 %v904, %v913
        %v922 = vsub.f32 %v905, %v916
        %v923 = vsub.f32 %v906, %v919
        %v924 = vmul.f32 %v920, 1.442695
        %v925 = vpow.pop %v924
        %v926 = vmul.f32 %v921, 1.442695
        %v927 = vpow.pop %v926
        %v928 = vmul.f32 %v922, 1.442695
        %v929 = vpow.pop %v928
        %v930 = vmul.f32 %v923, 1.442695
        %v931 = vpow.pop %v930
        %v932 = vsel %vm907, %v925, 0.0
        %933 = vadd.xlane.f32.xlu0 %v932
        %v934 = vpop.xlane.xlu0 %933
        %v935 = vsel %vm907, %v927, 0.0
        %936 = vadd.xlane.f32.xlu0 %v935
        %v937 = vpop.xlane.xlu0 %936
        %v938 = vsel %vm907, %v929, 0.0
        %939 = vadd.xlane.f32.xlu0 %v938
        %v940 = vpop.xlane.xlu0 %939
        %v941 = vsel %vm907, %v931, 0.0
        %942 = vadd.xlane.f32.xlu0 %v941
        %v943 = vpop.xlane.xlu0 %942
        %v944 = vrcp.pop %v934
        %v945 = vrcp.pop %v937
        %v946 = vrcp.pop %v940
        %v947 = vrcp.pop %v943
        %v948 = vmul.f32 %v925, %v944
        %v949 = vmul.f32 %v927, %v945
        %v950 = vmul.f32 %v929, %v946
        %v951 = vmul.f32 %v931, %v947
        %v952 = vpack.c.bf16 %v949, %v948
        %v953 = vpack.c.bf16 %v951, %v950
        %v955 = vsel %vm907, %v952, 0
        %957 = vmatprep.subr.bf16.mxu0 0
        %958 = vmatpush1.bf16.msra.mxu0 %v812
        %959 = vmatprep.subr.bf16.mxu0 0
        %960 = vmatpush1.bf16.msra.mxu0 0
        %961 = vmatprep.subr.bf16.mxu0 0
        %962 = vmatpush1.bf16.msra.mxu0 0
        %963 = vmatprep.subr.bf16.mxu0 0
        %964 = vmatpush1.bf16.msra.mxu0 0
        %965 = vmatprep.subr.bf16.mxu0 0
        %966 = vmatpush1.bf16.msra.mxu0 0
        %967 = vmatprep.subr.bf16.mxu0 0
        %968 = vmatpush1.bf16.msra.mxu0 0
        %969 = vmatprep.subr.bf16.mxu0 0
        %970 = vmatpush1.bf16.msra.mxu0 0
        %971 = vmatprep.subr.bf16.mxu0 0
        %972 = vmatpush1.bf16.msra.mxu0 0
        %973 = vmatprep.subr.bf16.mxu0 0
        %974 = vmatpush1.bf16.msra.mxu0 0
        %975 = vmatprep.subr.bf16.mxu0 0
        %976 = vmatpush1.bf16.msra.mxu0 0
        %977 = vmatprep.subr.bf16.mxu0 0
        %978 = vmatpush1.bf16.msra.mxu0 0
        %979 = vmatprep.subr.bf16.mxu0 0
        %980 = vmatpush1.bf16.msra.mxu0 0
        %981 = vmatprep.subr.bf16.mxu0 0
        %982 = vmatpush1.bf16.msra.mxu0 0
        %983 = vmatprep.subr.bf16.mxu0 0
        %984 = vmatpush1.bf16.msra.mxu0 0
        %985 = vmatprep.subr.bf16.mxu0 0
        %986 = vmatpush1.bf16.msra.mxu0 0
        %987 = vmatprep.subr.bf16.mxu0 0
        %988 = vmatpush1.bf16.msra.mxu0 0
        %989 = vmatprep.mubr.bf16.mxu0 0
        %990 = vmatmul.mubr.bf16.gmra.mrb[0].mxu0 %v955
        %v991 = vpop.f32.mrb[0].mxu0
        %v992 = vadd.f32 0.0, %v991
        %v993 = vpop.f32.mrb[0].mxu0
        %v994 = vpop.f32.mrb[0].mxu0
        %v995 = vadd.f32 0.0, %v994
        %v996 = vpop.f32.mrb[0].mxu0
        %997 = vdwg.mxu0
        %v999 = vsel %vm907, %v953, 0
        %1001 = vmatprep.subr.bf16.mxu0 0
        %1002 = vmatpush1.bf16.msra.mxu0 %v813
        %1003 = vmatprep.subr.bf16.mxu0 0
        %1004 = vmatpush1.bf16.msra.mxu0 0
        %1005 = vmatprep.subr.bf16.mxu0 0
        %1006 = vmatpush1.bf16.msra.mxu0 0
        %1007 = vmatprep.subr.bf16.mxu0 0
        %1008 = vmatpush1.bf16.msra.mxu0 0
        %1009 = vmatprep.subr.bf16.mxu0 0
        %1010 = vmatpush1.bf16.msra.mxu0 0
        %1011 = vmatprep.subr.bf16.mxu0 0
        %1012 = vmatpush1.bf16.msra.mxu0 0
        %1013 = vmatprep.subr.bf16.mxu0 0
        %1014 = vmatpush1.bf16.msra.mxu0 0
        %1015 = vmatprep.subr.bf16.mxu0 0
        %1016 = vmatpush1.bf16.msra.mxu0 0
        %1017 = vmatprep.subr.bf16.mxu0 0
        %1018 = vmatpush1.bf16.msra.mxu0 0
        %1019 = vmatprep.subr.bf16.mxu0 0
        %1020 = vmatpush1.bf16.msra.mxu0 0
        %1021 = vmatprep.subr.bf16.mxu0 0
        %1022 = vmatpush1.bf16.msra.mxu0 0
        %1023 = vmatprep.subr.bf16.mxu0 0
        %1024 = vmatpush1.bf16.msra.mxu0 0
        %1025 = vmatprep.subr.bf16.mxu0 0
        %1026 = vmatpush1.bf16.msra.mxu0 0
        %1027 = vmatprep.subr.bf16.mxu0 0
        %1028 = vmatpush1.bf16.msra.mxu0 0
        %1029 = vmatprep.subr.bf16.mxu0 0
        %1030 = vmatpush1.bf16.msra.mxu0 0
        %1031 = vmatprep.subr.bf16.mxu0 0
        %1032 = vmatpush1.bf16.msra.mxu0 0
        %1033 = vmatprep.mubr.bf16.mxu0 0
        %1034 = vmatmul.mubr.bf16.gmra.mrb[0].mxu0 %v999
        %v1035 = vpop.f32.mrb[0].mxu0
        %v1036 = vadd.f32 0.0, %v1035
        %v1037 = vpop.f32.mrb[0].mxu0
        %v1038 = vpop.f32.mrb[0].mxu0
        %v1039 = vadd.f32 0.0, %v1038
        %v1040 = vpop.f32.mrb[0].mxu0
        %1041 = vdwg.mxu0
        %v1042 = vpack.c.bf16 %v995, %v992
        %v1043 = vpack.c.bf16 %v1039, %v1036
        %v1044 = vld [vmem:[#allocation7] sm:$0xf]
        %v1045 = vld [vmem:[#allocation7 + $0x4] sm:$0xf]
        %v1046 = vld [vmem:[#allocation7 + $0x8] sm:$0xf]
        %v1047 = vld [vmem:[#allocation7 + $0xc] sm:$0xf]
        %v1048 = vld [vmem:[#allocation7 + $0x10] sm:$0xf]
        %v1049 = vld [vmem:[#allocation7 + $0x14] sm:$0xf]
        %v1050 = vld [vmem:[#allocation7 + $0x18] sm:$0xf]
        %v1051 = vld [vmem:[#allocation7 + $0x1c] sm:$0xf]
        %v1052 = vld [vmem:[#allocation7 + $0x20] sm:$0xf]
        %v1053 = vld [vmem:[#allocation7 + $0x24] sm:$0xf]
        %v1054 = vld [vmem:[#allocation7 + $0x28] sm:$0xf]
        %v1055 = vld [vmem:[#allocation7 + $0x2c] sm:$0xf]
        %v1056 = vld [vmem:[#allocation7 + $0x30] sm:$0xf]
        %v1057 = vld [vmem:[#allocation7 + $0x34] sm:$0xf]
        %v1058 = vld [vmem:[#allocation7 + $0x38] sm:$0xf]
        %v1059 = vld [vmem:[#allocation7 + $0x3c] sm:$0xf]
        %v1060 = vld [vmem:[%s4] sm:$0x1]
        %v1062 = vlaneseq
        %v1063 = vshrl.u32 %v1062, 7
        %v1064 = vsub.s32 0, %v1063
        %v1065 = vrot.slane %v1060, %v1064
        %v1083 = vunpack.c.l.b16 %v1044
        %v1084 = vunpack.c.l.b16 %v1045
        %v1085 = vunpack.c.l.b16 %v1046
        %v1086 = vunpack.c.l.b16 %v1047
        %v1087 = vunpack.c.l.b16 %v1048
        %v1088 = vunpack.c.l.b16 %v1049
        %v1089 = vunpack.c.l.b16 %v1050
        %v1090 = vunpack.c.l.b16 %v1051
        %v1091 = vunpack.c.l.b16 %v1052
        %v1092 = vunpack.c.l.b16 %v1053
        %v1093 = vunpack.c.l.b16 %v1054
        %v1094 = vunpack.c.l.b16 %v1055
        %v1095 = vunpack.c.l.b16 %v1056
        %v1096 = vunpack.c.l.b16 %v1057
        %v1097 = vunpack.c.l.b16 %v1058
        %v1098 = vunpack.c.l.b16 %v1059
        %v1099 = vpack.c.b16 %v1084, %v1083
        %v1100 = vpack.c.b16 %v1086, %v1085
        %v1101 = vpack.c.b16 %v1088, %v1087
        %v1102 = vpack.c.b16 %v1090, %v1089
        %v1103 = vpack.c.b16 %v1092, %v1091
        %v1104 = vpack.c.b16 %v1094, %v1093
        %v1105 = vpack.c.b16 %v1096, %v1095
        %v1106 = vpack.c.b16 %v1098, %v1097
        %1115 = vmatprep.subr.bf16.mxu0 0
        %1116 = vmatpush1.bf16.msra.mxu0 %v1099
        %1117 = vmatprep.subr.bf16.mxu0 0
        %1118 = vmatpush1.bf16.msra.mxu0 %v1100
        %1119 = vmatprep.subr.bf16.mxu0 0
        %1120 = vmatpush1.bf16.msra.mxu0 %v1101
        %1121 = vmatprep.subr.bf16.mxu0 0
        %1122 = vmatpush1.bf16.msra.mxu0 %v1102
        %1123 = vmatprep.subr.bf16.mxu0 0
        %1124 = vmatpush1.bf16.msra.mxu0 %v1103
        %1125 = vmatprep.subr.bf16.mxu0 0
        %1126 = vmatpush1.bf16.msra.mxu0 %v1104
        %1127 = vmatprep.subr.bf16.mxu0 0
        %1128 = vmatpush1.bf16.msra.mxu0 %v1105
        %1129 = vmatprep.subr.bf16.mxu0 0
        %1130 = vmatpush1.bf16.msra.mxu0 %v1106
        %1131 = vmatprep.subr.bf16.mxu0 0
        %1132 = vmatpush1.bf16.msra.mxu0 0
        %1133 = vmatprep.subr.bf16.mxu0 0
        %1134 = vmatpush1.bf16.msra.mxu0 0
        %1135 = vmatprep.subr.bf16.mxu0 0
        %1136 = vmatpush1.bf16.msra.mxu0 0
        %1137 = vmatprep.subr.bf16.mxu0 0
        %1138 = vmatpush1.bf16.msra.mxu0 0
        %1139 = vmatprep.subr.bf16.mxu0 0
        %1140 = vmatpush1.bf16.msra.mxu0 0
        %1141 = vmatprep.subr.bf16.mxu0 0
        %1142 = vmatpush1.bf16.msra.mxu0 0
        %1143 = vmatprep.subr.bf16.mxu0 0
        %1144 = vmatpush1.bf16.msra.mxu0 0
        %1145 = vmatprep.subr.bf16.mxu0 0
        %1146 = vmatpush1.bf16.msra.mxu0 0
        %1147 = vmatprep.mubr.bf16.mxu0 0
        %1148 = vmatmul.mubr.bf16.gmra.mrb[0].mxu0 %v1042
        %v1149 = vpop.f32.mrb[0].mxu0
        %v1150 = vadd.f32 %v1065, %v1149
        %v1151 = vpop.f32.mrb[0].mxu0
        %v1152 = vpop.f32.mrb[0].mxu0
        %v1153 = vadd.f32 %v1065, %v1152
        %v1154 = vpop.f32.mrb[0].mxu0
        %1155 = vmatprep.mubr.bf16.mxu0 0
        %1156 = vmatmul.mubr.bf16.gmra.mrb[0].mxu0 %v1043
        %v1157 = vpop.f32.mrb[0].mxu0
        %v1158 = vadd.f32 %v1065, %v1157
        %v1159 = vpop.f32.mrb[0].mxu0
        %v1160 = vpop.f32.mrb[0].mxu0
        %v1161 = vadd.f32 %v1065, %v1160
        %v1162 = vpop.f32.mrb[0].mxu0
        %1163 = vdwg.mxu0
        %v1164 = vadd.f32 %v520, %v1150
        %v1165 = vadd.f32 %v521, %v1153
        %v1166 = vadd.f32 %v522, %v1158
        %v1167 = vadd.f32 %v523, %v1161
        %v1168 = vld [vmem:[%s9] sm:$0x1]
        %v1169 = vld [vmem:[%s10] sm:$0x1]
        %1170 = vadd.xlane.f32.xlu0 %v1164
        %v1171 = vpop.xlane.xlu0 %1170
        %1172 = vadd.xlane.f32.xlu0 %v1165
        %v1173 = vpop.xlane.xlu0 %1172
        %1174 = vadd.xlane.f32.xlu0 %v1166
        %v1175 = vpop.xlane.xlu0 %1174
        %1176 = vadd.xlane.f32.xlu0 %v1167
        %v1177 = vpop.xlane.xlu0 %1176
        %v1178 = vmul.f32 %v1171, 0.03125
        %v1179 = vmul.f32 %v1173, 0.03125
        %v1180 = vmul.f32 %v1175, 0.03125
        %v1181 = vmul.f32 %v1177, 0.03125
        %v1182 = vsub.f32 %v1164, %v1178
        %v1183 = vsub.f32 %v1165, %v1179
        %v1184 = vsub.f32 %v1166, %v1180
        %v1185 = vsub.f32 %v1167, %v1181
        %v1186 = vsel %vm526, 1, 0
        %vm1187 = vcmp.eq.s32.totalorder %v1186, 1
        %v1188 = vsel %vm1187, %v1182, 0.0
        %v1189 = vsel %vm1187, %v1183, 0.0
        %v1190 = vsel %vm1187, %v1184, 0.0
        %v1191 = vsel %vm1187, %v1185, 0.0
        %v1192 = vmul.f32 %v1188, %v1188
        %v1193 = vmul.f32 %v1189, %v1189
        %v1194 = vmul.f32 %v1190, %v1190
        %v1195 = vmul.f32 %v1191, %v1191
        %1196 = vadd.xlane.f32.xlu0 %v1192
        %v1197 = vpop.xlane.xlu0 %1196
        %1198 = vadd.xlane.f32.xlu0 %v1193
        %v1199 = vpop.xlane.xlu0 %1198
        %1200 = vadd.xlane.f32.xlu0 %v1194
        %v1201 = vpop.xlane.xlu0 %1200
        %1202 = vadd.xlane.f32.xlu0 %v1195
        %v1203 = vpop.xlane.xlu0 %1202
        %v1204 = vmul.f32 %v1197, 0.03125
        %v1205 = vmul.f32 %v1199, 0.03125
        %v1206 = vmul.f32 %v1201, 0.03125
        %v1207 = vmul.f32 %v1203, 0.03125
        %v1208 = vadd.f32 %v1204, 1e-05
        %v1209 = vadd.f32 %v1205, 1e-05
        %v1210 = vadd.f32 %v1206, 1e-05
        %v1211 = vadd.f32 %v1207, 1e-05
        %v1212 = vrsqrt.pop %v1208
        %v1213 = vrsqrt.pop %v1209
        %v1214 = vrsqrt.pop %v1210
        %v1215 = vrsqrt.pop %v1211
        %v1216 = vmul.f32 %v1182, %v1212
        %v1217 = vmul.f32 %v1183, %v1213
        %v1218 = vmul.f32 %v1184, %v1214
        %v1219 = vmul.f32 %v1185, %v1215
        %v1221 = vlaneseq
        %v1222 = vshrl.u32 %v1221, 7
        %v1223 = vsub.s32 0, %v1222
        %v1224 = vrot.slane %v1168, %v1223
        %v1226 = vmul.f32 %v1216, %v1224
        %v1227 = vmul.f32 %v1217, %v1224
        %v1228 = vmul.f32 %v1218, %v1224
        %v1229 = vmul.f32 %v1219, %v1224
        %v1231 = vlaneseq
        %v1232 = vshrl.u32 %v1231, 7
        %v1233 = vsub.s32 0, %v1232
        %v1234 = vrot.slane %v1169, %v1233
        %v1236 = vadd.f32 %v1226, %v1234
        %v1237 = vadd.f32 %v1227, %v1234
        %v1238 = vadd.f32 %v1228, %v1234
        %v1239 = vadd.f32 %v1229, %v1234
        %v1240 = vpack.c.bf16 %v1237, %v1236
        %v1241 = vpack.c.bf16 %v1239, %v1238
        %v1242 = vld [vmem:[#allocation8] sm:$0xf]
        %v1243 = vld [vmem:[#allocation8 + $0x4] sm:$0xf]
        %v1244 = vld [vmem:[#allocation8 + $0x8] sm:$0xf]
        %v1245 = vld [vmem:[#allocation8 + $0xc] sm:$0xf]
        %v1246 = vld [vmem:[#allocation8 + $0x10] sm:$0xf]
        %v1247 = vld [vmem:[#allocation8 + $0x14] sm:$0xf]
        %v1248 = vld [vmem:[#allocation8 + $0x18] sm:$0xf]
        %v1249 = vld [vmem:[#allocation8 + $0x1c] sm:$0xf]
        %v1250 = vld [vmem:[#allocation8 + $0x20] sm:$0xf]
        %v1251 = vld [vmem:[#allocation8 + $0x24] sm:$0xf]
        %v1252 = vld [vmem:[#allocation8 + $0x28] sm:$0xf]
        %v1253 = vld [vmem:[#allocation8 + $0x2c] sm:$0xf]
        %v1254 = vld [vmem:[#allocation8 + $0x30] sm:$0xf]
        %v1255 = vld [vmem:[#allocation8 + $0x34] sm:$0xf]
        %v1256 = vld [vmem:[#allocation8 + $0x38] sm:$0xf]
        %v1257 = vld [vmem:[#allocation8 + $0x3c] sm:$0xf]
        %v1258 = vld [vmem:[%s6] sm:$0x1]
        %v1260 = vlaneseq
        %v1261 = vshrl.u32 %v1260, 7
        %v1262 = vsub.s32 0, %v1261
        %v1263 = vrot.slane %v1258, %v1262
        %v1281 = vunpack.c.l.b16 %v1242
        %v1282 = vunpack.c.l.b16 %v1243
        %v1283 = vunpack.c.l.b16 %v1244
        %v1284 = vunpack.c.l.b16 %v1245
        %v1285 = vunpack.c.l.b16 %v1246
        %v1286 = vunpack.c.l.b16 %v1247
        %v1287 = vunpack.c.l.b16 %v1248
        %v1288 = vunpack.c.l.b16 %v1249
        %v1289 = vunpack.c.l.b16 %v1250
        %v1290 = vunpack.c.l.b16 %v1251
        %v1291 = vunpack.c.l.b16 %v1252
        %v1292 = vunpack.c.l.b16 %v1253
        %v1293 = vunpack.c.l.b16 %v1254
        %v1294 = vunpack.c.l.b16 %v1255
        %v1295 = vunpack.c.l.b16 %v1256
        %v1296 = vunpack.c.l.b16 %v1257
        %v1297 = vpack.c.b16 %v1282, %v1281
        %v1298 = vpack.c.b16 %v1284, %v1283
        %v1299 = vpack.c.b16 %v1286, %v1285
        %v1300 = vpack.c.b16 %v1288, %v1287
        %v1301 = vpack.c.b16 %v1290, %v1289
        %v1302 = vpack.c.b16 %v1292, %v1291
        %v1303 = vpack.c.b16 %v1294, %v1293
        %v1304 = vpack.c.b16 %v1296, %v1295
        %1313 = vmatprep.subr.bf16.mxu0 0
        %1314 = vmatpush1.bf16.msra.mxu0 %v1297
        %1315 = vmatprep.subr.bf16.mxu0 0
        %1316 = vmatpush1.bf16.msra.mxu0 %v1298
        %1317 = vmatprep.subr.bf16.mxu0 0
        %1318 = vmatpush1.bf16.msra.mxu0 %v1299
        %1319 = vmatprep.subr.bf16.mxu0 0
        %1320 = vmatpush1.bf16.msra.mxu0 %v1300
        %1321 = vmatprep.subr.bf16.mxu0 0
        %1322 = vmatpush1.bf16.msra.mxu0 %v1301
        %1323 = vmatprep.subr.bf16.mxu0 0
        %1324 = vmatpush1.bf16.msra.mxu0 %v1302
        %1325 = vmatprep.subr.bf16.mxu0 0
        %1326 = vmatpush1.bf16.msra.mxu0 %v1303
        %1327 = vmatprep.subr.bf16.mxu0 0
        %1328 = vmatpush1.bf16.msra.mxu0 %v1304
        %1329 = vmatprep.subr.bf16.mxu0 0
        %1330 = vmatpush1.bf16.msra.mxu0 0
        %1331 = vmatprep.subr.bf16.mxu0 0
        %1332 = vmatpush1.bf16.msra.mxu0 0
        %1333 = vmatprep.subr.bf16.mxu0 0
        %1334 = vmatpush1.bf16.msra.mxu0 0
        %1335 = vmatprep.subr.bf16.mxu0 0
        %1336 = vmatpush1.bf16.msra.mxu0 0
        %1337 = vmatprep.subr.bf16.mxu0 0
        %1338 = vmatpush1.bf16.msra.mxu0 0
        %1339 = vmatprep.subr.bf16.mxu0 0
        %1340 = vmatpush1.bf16.msra.mxu0 0
        %1341 = vmatprep.subr.bf16.mxu0 0
        %1342 = vmatpush1.bf16.msra.mxu0 0
        %1343 = vmatprep.subr.bf16.mxu0 0
        %1344 = vmatpush1.bf16.msra.mxu0 0
        %1345 = vmatprep.mubr.bf16.mxu0 0
        %1346 = vmatmul.mubr.bf16.gmra.mrb[0].mxu0 %v1240
        %v1347 = vpop.f32.mrb[0].mxu0
        %v1348 = vadd.f32 %v1263, %v1347
        %v1349 = vpop.f32.mrb[0].mxu0
        %v1350 = vpop.f32.mrb[0].mxu0
        %v1351 = vadd.f32 %v1263, %v1350
        %v1352 = vpop.f32.mrb[0].mxu0
        %1353 = vmatprep.mubr.bf16.mxu0 0
        %1354 = vmatmul.mubr.bf16.gmra.mrb[0].mxu0 %v1241
        %v1355 = vpop.f32.mrb[0].mxu0
        %v1356 = vadd.f32 %v1263, %v1355
        %v1357 = vpop.f32.mrb[0].mxu0
        %v1358 = vpop.f32.mrb[0].mxu0
        %v1359 = vadd.f32 %v1263, %v1358
        %v1360 = vpop.f32.mrb[0].mxu0
        %1361 = vdwg.mxu0
        %v1362 = vmax.f32 %v1348, 0.0
        %v1363 = vmax.f32 %v1351, 0.0
        %v1364 = vmax.f32 %v1356, 0.0
        %v1365 = vmax.f32 %v1359, 0.0
        %v1366 = vpack.c.bf16 %v1363, %v1362
        %v1367 = vpack.c.bf16 %v1365, %v1364
        %v1368 = vld [vmem:[#allocation10] sm:$0xf]
        %v1369 = vld [vmem:[#allocation10 + $0x4] sm:$0xf]
        %v1370 = vld [vmem:[#allocation10 + $0x8] sm:$0xf]
        %v1371 = vld [vmem:[#allocation10 + $0xc] sm:$0xf]
        %v1372 = vld [vmem:[#allocation10 + $0x10] sm:$0xf]
        %v1373 = vld [vmem:[#allocation10 + $0x14] sm:$0xf]
        %v1374 = vld [vmem:[#allocation10 + $0x18] sm:$0xf]
        %v1375 = vld [vmem:[#allocation10 + $0x1c] sm:$0xf]
        %v1376 = vld [vmem:[#allocation10 + $0x20] sm:$0xf]
        %v1377 = vld [vmem:[#allocation10 + $0x24] sm:$0xf]
        %v1378 = vld [vmem:[#allocation10 + $0x28] sm:$0xf]
        %v1379 = vld [vmem:[#allocation10 + $0x2c] sm:$0xf]
        %v1380 = vld [vmem:[#allocation10 + $0x30] sm:$0xf]
        %v1381 = vld [vmem:[#allocation10 + $0x34] sm:$0xf]
        %v1382 = vld [vmem:[#allocation10 + $0x38] sm:$0xf]
        %v1383 = vld [vmem:[#allocation10 + $0x3c] sm:$0xf]
        %v1384 = vld [vmem:[%s8] sm:$0x1]
        %v1386 = vlaneseq
        %v1387 = vshrl.u32 %v1386, 7
        %v1388 = vsub.s32 0, %v1387
        %v1389 = vrot.slane %v1384, %v1388
        %v1407 = vunpack.c.l.b16 %v1368
        %v1408 = vunpack.c.l.b16 %v1369
        %v1409 = vunpack.c.l.b16 %v1370
        %v1410 = vunpack.c.l.b16 %v1371
        %v1411 = vunpack.c.l.b16 %v1372
        %v1412 = vunpack.c.l.b16 %v1373
        %v1413 = vunpack.c.l.b16 %v1374
        %v1414 = vunpack.c.l.b16 %v1375
        %v1415 = vunpack.c.l.b16 %v1376
        %v1416 = vunpack.c.l.b16 %v1377
        %v1417 = vunpack.c.l.b16 %v1378
        %v1418 = vunpack.c.l.b16 %v1379
        %v1419 = vunpack.c.l.b16 %v1380
        %v1420 = vunpack.c.l.b16 %v1381
        %v1421 = vunpack.c.l.b16 %v1382
        %v1422 = vunpack.c.l.b16 %v1383
        %v1423 = vpack.c.b16 %v1408, %v1407
        %v1424 = vpack.c.b16 %v1410, %v1409
        %v1425 = vpack.c.b16 %v1412, %v1411
        %v1426 = vpack.c.b16 %v1414, %v1413
        %v1427 = vpack.c.b16 %v1416, %v1415
        %v1428 = vpack.c.b16 %v1418, %v1417
        %v1429 = vpack.c.b16 %v1420, %v1419
        %v1430 = vpack.c.b16 %v1422, %v1421
        %1439 = vmatprep.subr.bf16.mxu0 0
        %1440 = vmatpush1.bf16.msra.mxu0 %v1423
        %1441 = vmatprep.subr.bf16.mxu0 0
        %1442 = vmatpush1.bf16.msra.mxu0 %v1424
        %1443 = vmatprep.subr.bf16.mxu0 0
        %1444 = vmatpush1.bf16.msra.mxu0 %v1425
        %1445 = vmatprep.subr.bf16.mxu0 0
        %1446 = vmatpush1.bf16.msra.mxu0 %v1426
        %1447 = vmatprep.subr.bf16.mxu0 0
        %1448 = vmatpush1.bf16.msra.mxu0 %v1427
        %1449 = vmatprep.subr.bf16.mxu0 0
        %1450 = vmatpush1.bf16.msra.mxu0 %v1428
        %1451 = vmatprep.subr.bf16.mxu0 0
        %1452 = vmatpush1.bf16.msra.mxu0 %v1429
        %1453 = vmatprep.subr.bf16.mxu0 0
        %1454 = vmatpush1.bf16.msra.mxu0 %v1430
        %1455 = vmatprep.subr.bf16.mxu0 0
        %1456 = vmatpush1.bf16.msra.mxu0 0
        %1457 = vmatprep.subr.bf16.mxu0 0
        %1458 = vmatpush1.bf16.msra.mxu0 0
        %1459 = vmatprep.subr.bf16.mxu0 0
        %1460 = vmatpush1.bf16.msra.mxu0 0
        %1461 = vmatprep.subr.bf16.mxu0 0
        %1462 = vmatpush1.bf16.msra.mxu0 0
        %1463 = vmatprep.subr.bf16.mxu0 0
        %1464 = vmatpush1.bf16.msra.mxu0 0
        %1465 = vmatprep.subr.bf16.mxu0 0
        %1466 = vmatpush1.bf16.msra.mxu0 0
        %1467 = vmatprep.subr.bf16.mxu0 0
        %1468 = vmatpush1.bf16.msra.mxu0 0
        %1469 = vmatprep.subr.bf16.mxu0 0
        %1470 = vmatpush1.bf16.msra.mxu0 0
        %1471 = vmatprep.mubr.bf16.mxu0 0
        %1472 = vmatmul.mubr.bf16.gmra.mrb[0].mxu0 %v1366
        %v1473 = vpop.f32.mrb[0].mxu0
        %v1474 = vadd.f32 %v1389, %v1473
        %v1475 = vpop.f32.mrb[0].mxu0
        %v1476 = vpop.f32.mrb[0].mxu0
        %v1477 = vadd.f32 %v1389, %v1476
        %v1478 = vpop.f32.mrb[0].mxu0
        %1479 = vmatprep.mubr.bf16.mxu0 0
        %1480 = vmatmul.mubr.bf16.gmra.mrb[0].mxu0 %v1367
        %v1481 = vpop.f32.mrb[0].mxu0
        %v1482 = vadd.f32 %v1389, %v1481
        %v1483 = vpop.f32.mrb[0].mxu0
        %v1484 = vpop.f32.mrb[0].mxu0
        %v1485 = vadd.f32 %v1389, %v1484
        %v1486 = vpop.f32.mrb[0].mxu0
        %1487 = vdwg.mxu0
        %v1488 = vadd.f32 %v1236, %v1474
        %v1489 = vadd.f32 %v1237, %v1477
        %v1490 = vadd.f32 %v1238, %v1482
        %v1491 = vadd.f32 %v1239, %v1485
        %v1492 = vld [vmem:[%s11] sm:$0x1]
        %v1493 = vld [vmem:[%s12] sm:$0x1]
        %1494 = vadd.xlane.f32.xlu0 %v1488
        %v1495 = vpop.xlane.xlu0 %1494
        %1496 = vadd.xlane.f32.xlu0 %v1489
        %v1497 = vpop.xlane.xlu0 %1496
        %1498 = vadd.xlane.f32.xlu0 %v1490
        %v1499 = vpop.xlane.xlu0 %1498
        %1500 = vadd.xlane.f32.xlu0 %v1491
        %v1501 = vpop.xlane.xlu0 %1500
        %v1502 = vmul.f32 %v1495, 0.03125
        %v1503 = vmul.f32 %v1497, 0.03125
        %v1504 = vmul.f32 %v1499, 0.03125
        %v1505 = vmul.f32 %v1501, 0.03125
        %v1506 = vsub.f32 %v1488, %v1502
        %v1507 = vsub.f32 %v1489, %v1503
        %v1508 = vsub.f32 %v1490, %v1504
        %v1509 = vsub.f32 %v1491, %v1505
        %v1510 = vsel %vm1187, %v1506, 0.0
        %v1511 = vsel %vm1187, %v1507, 0.0
        %v1512 = vsel %vm1187, %v1508, 0.0
        %v1513 = vsel %vm1187, %v1509, 0.0
        %v1514 = vmul.f32 %v1510, %v1510
        %v1515 = vmul.f32 %v1511, %v1511
        %v1516 = vmul.f32 %v1512, %v1512
        %v1517 = vmul.f32 %v1513, %v1513
        %1518 = vadd.xlane.f32.xlu0 %v1514
        %v1519 = vpop.xlane.xlu0 %1518
        %1520 = vadd.xlane.f32.xlu0 %v1515
        %v1521 = vpop.xlane.xlu0 %1520
        %1522 = vadd.xlane.f32.xlu0 %v1516
        %v1523 = vpop.xlane.xlu0 %1522
        %1524 = vadd.xlane.f32.xlu0 %v1517
        %v1525 = vpop.xlane.xlu0 %1524
        %v1526 = vmul.f32 %v1519, 0.03125
        %v1527 = vmul.f32 %v1521, 0.03125
        %v1528 = vmul.f32 %v1523, 0.03125
        %v1529 = vmul.f32 %v1525, 0.03125
        %v1530 = vadd.f32 %v1526, 1e-05
        %v1531 = vadd.f32 %v1527, 1e-05
        %v1532 = vadd.f32 %v1528, 1e-05
        %v1533 = vadd.f32 %v1529, 1e-05
        %v1534 = vrsqrt.pop %v1530
        %v1535 = vrsqrt.pop %v1531
        %v1536 = vrsqrt.pop %v1532
        %v1537 = vrsqrt.pop %v1533
        %v1538 = vmul.f32 %v1506, %v1534
        %v1539 = vmul.f32 %v1507, %v1535
        %v1540 = vmul.f32 %v1508, %v1536
        %v1541 = vmul.f32 %v1509, %v1537
        %v1543 = vlaneseq
        %v1544 = vshrl.u32 %v1543, 7
        %v1545 = vsub.s32 0, %v1544
        %v1546 = vrot.slane %v1492, %v1545
        %v1548 = vmul.f32 %v1538, %v1546
        %v1549 = vmul.f32 %v1539, %v1546
        %v1550 = vmul.f32 %v1540, %v1546
        %v1551 = vmul.f32 %v1541, %v1546
        %v1553 = vlaneseq
        %v1554 = vshrl.u32 %v1553, 7
        %v1555 = vsub.s32 0, %v1554
        %v1556 = vrot.slane %v1493, %v1555
        %v1558 = vadd.f32 %v1548, %v1556
        %v1559 = vadd.f32 %v1549, %v1556
        %v1560 = vadd.f32 %v1550, %v1556
        %v1561 = vadd.f32 %v1551, %v1556
        %1562 = vst [vmem:[%s516] sm:$0xff] %v1558
        %1563 = vst [vmem:[%s516 + $0x8] sm:$0xff] %v1559
        %1564 = vst [vmem:[%s516 + $0x10] sm:$0xff] %v1560
        %1565 = vst [vmem:[%s516 + $0x18] sm:$0xff] %v1561
        %s1566 = sand.u32 %s318, 1
        %s1567 = scalar_lea.sflag [#allocation4], %s1566
        %s1568 = sand.u32 %s318, 1
        %s1569 = smul.addr %s1568, 32
        %s1570 = scalar_lea.vmem [#allocation11], %s1569
        // Predicated region
        $region93: #{tpu_custom_call.1} parent=71 // pred_check
          %p1571 = pneg %p328
        $region94: #{tpu_custom_call.1} parent=71 // pred_check_branch
          %1573 = sbr.rel (%p1571) target = $region96
        $region95: #{tpu_custom_call.1} parent=71 // pred_region
          %s1574 = smul.u32 4, %s32
          %s1576 = ssub.s32 512, 512
          %1577 = vsyncadd %s1567, %s1576
          %s1578 = smul.addr %s1574, 128
          %s1579 = scalar_lea.hbm %s13, %s1578
          %s1580 = sshll.u32 %s1570, 4
          %s1581 = int_to_ptr.vmem [resolvable:$true] %s1580
          %1586 = dma.vmem_to_hbm [thread:$0]  %s1581, 512, %s1579, %s1567, 128, 128, 8
        $region96: #{tpu_custom_call.1} parent=71 // pred_fallthru
          _
      $region72: #{tpu_custom_call.1} parent=5 // pred_fallthru
        _
      %p1587 = scmp.le.s32.totalorder 2, %s27
      // Predicated region
      $region97: #{tpu_custom_call.1} parent=5 // pred_check
        %p1588 = pneg %p1587
      $region98: #{tpu_custom_call.1} parent=5 // pred_check_branch
        %1590 = sbr.rel (%p1588) target = $region100
      $region99: #{tpu_custom_call.1} parent=5 // pred_region
        %s1591 = ssub.s32 %s27, 2
        // Predicated region
        $region101: #{tpu_custom_call.1} parent=99 // pred_check
          %p1592 = pneg %p334
        $region102: #{tpu_custom_call.1} parent=99 // pred_check_branch
          %1594 = sbr.rel (%p1592) target = $region104
        $region103: #{tpu_custom_call.1} parent=99 // pred_region
          %s1595 = sand.u32 %s319, 1
          %s1596 = scalar_lea.sflag [#allocation4], %s1595
          %s1597 = sand.u32 %s319, 1
          %s1598 = smul.addr %s1597, 32
          %s1599 = scalar_lea.vmem [#allocation11], %s1598
          %1600 = dma.done %s1596, 512
        $region104: #{tpu_custom_call.1} parent=99 // pred_fallthru
          _
      $region100: #{tpu_custom_call.1} parent=5 // pred_fallthru
        _
    $region6: #{tpu_custom_call.1} parent=1 // loop_footer
      %s31 = sadd.s32 1, %s27
    $region7: #{tpu_custom_call.1} parent=1 // loop_footer_branch
      %26 = sbr.rel target = $region3
    $region8: #{tpu_custom_call.1} parent=1 // loop_exit
      _
    %1601 = vsyncpa [#allocation3], 1
    %s1602 = scalar_lea.sflag [#allocation3], 1
    %1603 = vsyncpa %s1602, 1
    %1604 = vsyncpa [#allocation6], 1
    %1605 = vsyncpa [#allocation9], 1
    %1606 = vsyncpa [#allocation4], 1
    %s1607 = scalar_lea.sflag [#allocation4], 1
    %1608 = vsyncpa %s1607, 1

</llo_original>
